<compile_context>
chip_gen: v7x
topology: tpu7x:2x2x1
jax: 0.10.0
libtpu: 0.0.40
codegen_flags: <defaults>
</compile_context>

<pallas_src>
import functools

import jax
import jax.numpy as jnp
from jax.experimental import pallas as pl
from jax.experimental.pallas import tpu as pltpu

_OUT_PAD = 128  # lane-dense output width (real channels live in the leading columns)


def _gat_layer_kernel(x_all_ref, x_dst_ref, w_ref, a_ref, b_ref, mask_ref, out_ref,
                      *, heads, ch, relu):
  """One GAT layer for one tile of destination rows; all sources stay resident."""
  hc = heads * ch

  # Linear transform (MXU).  xp for ALL nodes is needed as aggregation sources; the
  # tiny per-tile recompute of xp_dst avoids a dynamic value slice.
  xp_all = jnp.dot(x_all_ref[...], w_ref[...], preferred_element_type=jnp.float32)
  xp_dst = jnp.dot(x_dst_ref[...], w_ref[...], preferred_element_type=jnp.float32)

  # Per-head attention scalars via ONE matmul against the fused [H*C, 2H] block-diag
  # attention vectors: columns [:H] -> a_src, columns [H:] -> a_dst.
  alpha_all = jnp.dot(xp_all, a_ref[...], preferred_element_type=jnp.float32)
  alpha_dst = jnp.dot(xp_dst, a_ref[...], preferred_element_type=jnp.float32)[:, heads:]
  alpha_src_t = alpha_all[:, :heads].T           # [H, N] — one XLU transpose, all heads

  add_mask = mask_ref[...].astype(jnp.float32)   # [T, N]; bf16 in HBM, f32 elementwise
  xp_bf = xp_all.astype(jnp.bfloat16)            # MXU-side dtype for aggregation

  head_outs = []
  for h in range(heads):                         # heads is small & static -> unrolled
    # e[i, j] = leaky_relu(alpha_dst[i] + alpha_src[j]) + additive mask   (row = dst)
    e = alpha_dst[:, h:h + 1] + alpha_src_t[h:h + 1, :]         # [T, N]
    e = jnp.where(e > 0, e, 0.2 * e)
    e = e + add_mask
    m = jnp.max(e, axis=-1, keepdims=True)
    p = jnp.exp(e - m)                                          # un-normalized probs
    s = jnp.sum(p, axis=-1, keepdims=True)
    # Aggregate with un-normalized p; fold the softmax normalization into the epilogue
    # (scale only the [T, C] result; divide lands on the EUP slot).
    agg = jnp.dot(p.astype(jnp.bfloat16), xp_bf[:, h * ch:(h + 1) * ch],
                  preferred_element_type=jnp.float32)           # [T, C]
    head_outs.append(agg * pl.reciprocal(s, approx=True))

  out = (head_outs[0] if heads == 1
         else jnp.concatenate(head_outs, axis=-1)) + b_ref[...]
  if relu:
    out = jnp.maximum(out, 0.0)

  # Lane-dense store: zero-pad the narrow channel dim up to the 128-wide output block.
  pad = out_ref.shape[-1] - hc
  if pad:
    out = jnp.concatenate([out, jnp.zeros((out.shape[0], pad), out.dtype)], axis=-1)
  out_ref[...] = out


def _gat_layer(x, w, a_fused, b, add_mask, *, heads, ch, relu, tile):
  """Run one GAT layer, gridded over destination-row tiles."""
  n, fin = x.shape
  hc = heads * ch
  grid_steps = n // tile

  kernel = functools.partial(_gat_layer_kernel, heads=heads, ch=ch, relu=relu)

  cost = pl.CostEstimate(
      flops=int(grid_steps * 2 * (n + tile) * fin * hc
                + grid_steps * 2 * (n + tile) * hc * 2 * heads
                + 2 * hc * n * n + 8 * heads * n * n),
      transcendentals=int(heads * n * n + heads * n),
      bytes_accessed=int(n * n * 2 + grid_steps * (n + tile) * fin * 4
                         + n * _OUT_PAD * 4 + grid_steps * fin * hc * 4))

  # VMEM budget derived from the tile sizes (2x headroom), capped at 48 MiB so we never
  # request all of a v7x core's 64 MiB; fine on v5e/v6e's 128 MiB as well.
  need = (2 * tile * n * 2             # mask tile, bf16, double-buffered
          + (n + 2 * tile) * fin * 4   # x (all nodes + tiled dst rows)
          + n * hc * (4 + 2)           # xp f32 + bf16 copy
          + 4 * tile * n * 4           # per-head e / p temporaries (f32)
          + 2 * tile * _OUT_PAD * 4    # output tile, double-buffered
          + (1 << 20))
  vmem_limit = int(min(max(2 * need, 8 << 20), 48 << 20))

  return pl.pallas_call(
      kernel,
      out_shape=jax.ShapeDtypeStruct((n, _OUT_PAD), jnp.float32),
      grid=(grid_steps,),
      in_specs=[
          pl.BlockSpec((n, fin), lambda i: (0, 0)),         # x, all nodes (sources)
          pl.BlockSpec((tile, fin), lambda i: (i, 0)),      # x, this dst-row tile
          pl.BlockSpec((fin, hc), lambda i: (0, 0)),        # W
          pl.BlockSpec((hc, 2 * heads), lambda i: (0, 0)),  # fused [a_src | a_dst]
          pl.BlockSpec((1, hc), lambda i: (0, 0)),          # bias
          pl.BlockSpec((tile, n), lambda i: (i, 0)),        # additive mask (bf16)
      ],
      out_specs=pl.BlockSpec((tile, _OUT_PAD), lambda i: (i, 0)),
      compiler_params=pltpu.CompilerParams(
          dimension_semantics=("parallel",),
          vmem_limit_bytes=vmem_limit),
      cost_estimate=cost,
  )(x, x, w, a_fused, b, add_mask)


def _block_diag_a(a):
  """[H, C] attention vector -> block-diagonal [H*C, H] so alpha = xp @ a_bd."""
  heads, c = a.shape
  out = jnp.zeros((heads * c, heads), jnp.float32)
  for h in range(heads):
    out = out.at[h * c:(h + 1) * c, h].set(a[h])
  return out


def build_additive_mask(edge_index, num_nodes):
  """mask[dst, src] = 0 for every edge (plus self loops), -1e30 otherwise (bf16)."""
  src, dst = edge_index[0], edge_index[1]
  adj = jnp.zeros((num_nodes, num_nodes), jnp.float32)
  adj = adj.at[dst, src].set(1.0)
  diag = jnp.arange(num_nodes)
  adj = adj.at[diag, diag].set(1.0)
  # bf16 shares f32's exponent range, so -1e30 is representable (do NOT use fp16 here).
  return jnp.where(adj > 0, 0.0, -1e30).astype(jnp.bfloat16)


def safe_gat(x, edge_index, params, *, tile_dst=256):
  """Forward: GATConv(in, 8, heads=4) -> ReLU -> GATConv(32, out, heads=1)."""
  n = x.shape[0]
  heads1, c1 = 4, 8
  c2 = params["w2"].shape[1]
  assert n % 8 == 0, "pad num_nodes to a multiple of 8"
  tile = tile_dst if (tile_dst <= n and n % tile_dst == 0) else n

  add_mask = build_additive_mask(edge_index, n)                       # [N, N] bf16

  a1 = jnp.concatenate([_block_diag_a(params["a_src1"]),
                        _block_diag_a(params["a_dst1"])], axis=1)     # [32, 8]
  a2 = jnp.concatenate([_block_diag_a(params["a_src2"]),
                        _block_diag_a(params["a_dst2"])], axis=1)     # [c2, 2]

  # Layer 1: [N, Fin] -> [N, 128] (real channels in [:, :32], rest exact zeros).
  h = _gat_layer(x, params["w1"], a1, params["b1"], add_mask,
                 heads=heads1, ch=c1, relu=True, tile=tile)

  # Layer 2 consumes the padded activation directly (lane-dense input); pad w2's rows
  # with zeros so the padding columns contribute nothing.
  w2_pad = jnp.zeros((_OUT_PAD, c2), jnp.float32).at[:heads1 * c1, :].set(params["w2"])
  out = _gat_layer(h, w2_pad, a2, params["b2"], add_mask,
                   heads=1, ch=c2, relu=False, tile=tile)
  return out[:, :c2]


def init_params(key, in_channels, out_channels):
  h1, c1 = 4, 8
  h2, c2 = 1, out_channels
  ks = jax.random.split(key, 6)

  def glorot(k, shape):
    fan = sum(shape[-2:]) if len(shape) > 1 else shape[-1]
    return jax.random.normal(k, shape, jnp.float32) * (2.0 / fan) ** 0.5

  return {
      "w1": glorot(ks[0], (in_channels, h1 * c1)),
      "a_src1": glorot(ks[1], (h1, c1)),
      "a_dst1": glorot(ks[2], (h1, c1)),
      "b1": jnp.zeros((1, h1 * c1), jnp.float32),
      "w2": glorot(ks[3], (h1 * c1, h2 * c2)),
      "a_src2": glorot(ks[4], (h2, c2)),
      "a_dst2": glorot(ks[5], (h2, c2)),
      "b2": jnp.zeros((1, h2 * c2), jnp.float32),
  }


def _reference(x, edge_index, params):
  """Pure-JAX f32 reference of the same dense-mask GAT math (sanity check)."""
  n = x.shape[0]
  src, dst = edge_index[0], edge_index[1]
  adj = jnp.zeros((n, n), jnp.float32).at[dst, src].set(1.0)
  diag = jnp.arange(n)
  adj = adj.at[diag, diag].set(1.0)

  def layer(x, w, a_src, a_dst, b, heads, c, relu):
    xp = (x @ w).reshape(n, heads, c)
    asrc = jnp.einsum("nhc,hc->nh", xp, a_src)
    adst = jnp.einsum("nhc,hc->nh", xp, a_dst)
    e = adst[:, None, :] + asrc[None, :, :]            # [N_dst, N_src, H]
    e = jnp.where(e > 0, e, 0.2 * e)
    e = jnp.where(adj[:, :, None] > 0, e, -1e30)
    attn = jax.nn.softmax(e, axis=1)
    out = jnp.einsum("ijh,jhc->ihc", attn, xp).reshape(n, heads * c) + b
    return jnp.maximum(out, 0.0) if relu else out

  h = layer(x, params["w1"], params["a_src1"], params["a_dst1"], params["b1"],
            4, 8, True)
  return layer(h, params["w2"], params["a_src2"], params["a_dst2"],
               params["b2"], 1, params["w2"].shape[1], False)


if __name__ == "__main__":
  key = jax.random.PRNGKey(0)
  k_x, k_e, k_p = jax.random.split(key, 3)

  num_nodes, in_channels, out_channels, num_edges = 64, 8, 4, 192
  x = jax.random.normal(k_x, (num_nodes, in_channels), jnp.float32)
  edge_index = jax.random.randint(k_e, (2, num_edges), 0, num_nodes, dtype=jnp.int32)
  params = init_params(k_p, in_channels, out_channels)

  # Small dst-row tile to exercise the parallel grid at this toy size; for real graphs
  # use ~256 rows on v7x (64 MiB VMEM) and ~512 on v5e/v6e (128 MiB).
  out = safe_gat(x, edge_index, params, tile_dst=16)
  out = jax.block_until_ready(out)

  ref = _reference(x, edge_index, params)
  assert out.shape == (num_nodes, out_channels)
  # Loose tolerance: bf16 aggregation matmuls + approx EUP reciprocal compound.
  assert jnp.allclose(out, ref, atol=5e-2, rtol=5e-2), float(jnp.max(jnp.abs(out - ref)))

  print("KERNEL_OK")
</pallas_src>

<mosaic_0001>
module attributes {stable_mosaic.version = 11 : i64} {
  func.func @_gat_layer_kernel(%arg0: i32, %arg1: memref<64x8xf32, #tpu.memory_space<vmem>>, %arg2: memref<16x8xf32, #tpu.memory_space<vmem>>, %arg3: memref<8x32xf32, #tpu.memory_space<vmem>>, %arg4: memref<32x8xf32, #tpu.memory_space<vmem>>, %arg5: memref<1x32xf32, #tpu.memory_space<vmem>>, %arg6: memref<16x64xbf16, #tpu.memory_space<vmem>>, %arg7: memref<16x128xf32, #tpu.memory_space<vmem>>) attributes {dimension_semantics = [#tpu.dimension_semantics<parallel>], iteration_bounds = array<i64: 4>, scalar_prefetch = 0 : i64, scratch_operands = 0 : i64, tpu.core_type = #tpu.core_type<tc>, window_params = [{pipeline_mode = #tpu.pipeline_mode<synchronous>, transform_indices = @transform_0, window_bounds = array<i64: 64, 8>}, {transform_indices = @transform_1, window_bounds = array<i64: 16, 8>}, {pipeline_mode = #tpu.pipeline_mode<synchronous>, transform_indices = @transform_2, window_bounds = array<i64: 8, 32>}, {pipeline_mode = #tpu.pipeline_mode<synchronous>, transform_indices = @transform_3, window_bounds = array<i64: 32, 8>}, {pipeline_mode = #tpu.pipeline_mode<synchronous>, transform_indices = @transform_4, window_bounds = array<i64: 1, 32>}, {transform_indices = @transform_5, window_bounds = array<i64: 16, 64>}, {transform_indices = @transform_6, window_bounds = array<i64: 16, 128>}]} {
    %c0 = arith.constant 0 : index
    %c0_0 = arith.constant 0 : index
    %0 = vector.load %arg1[%c0, %c0_0] : memref<64x8xf32, #tpu.memory_space<vmem>>, vector<64x8xf32>
    %c0_1 = arith.constant 0 : index
    %c0_2 = arith.constant 0 : index
    %1 = vector.load %arg3[%c0_1, %c0_2] : memref<8x32xf32, #tpu.memory_space<vmem>>, vector<8x32xf32>
    %cst = arith.constant dense<0.000000e+00> : vector<64x32xf32>
    %2 = tpu.matmul %0, %1, %cst {dimension_numbers = #tpu.dot_dimension_numbers<[1], [0], [0], [1], [0, 0, 1, 1], [], []>} : vector<64x8xf32>, vector<8x32xf32>, vector<64x32xf32> -> vector<64x32xf32>
    %c0_3 = arith.constant 0 : index
    %c0_4 = arith.constant 0 : index
    %3 = vector.load %arg2[%c0_3, %c0_4] : memref<16x8xf32, #tpu.memory_space<vmem>>, vector<16x8xf32>
    %c0_5 = arith.constant 0 : index
    %c0_6 = arith.constant 0 : index
    %4 = vector.load %arg3[%c0_5, %c0_6] : memref<8x32xf32, #tpu.memory_space<vmem>>, vector<8x32xf32>
    %cst_7 = arith.constant dense<0.000000e+00> : vector<16x32xf32>
    %5 = tpu.matmul %3, %4, %cst_7 {dimension_numbers = #tpu.dot_dimension_numbers<[1], [0], [0], [1], [0, 0, 1, 1], [], []>} : vector<16x8xf32>, vector<8x32xf32>, vector<16x32xf32> -> vector<16x32xf32>
    %c0_8 = arith.constant 0 : index
    %c0_9 = arith.constant 0 : index
    %6 = vector.load %arg4[%c0_8, %c0_9] : memref<32x8xf32, #tpu.memory_space<vmem>>, vector<32x8xf32>
    %cst_10 = arith.constant dense<0.000000e+00> : vector<64x8xf32>
    %7 = tpu.matmul %2, %6, %cst_10 {dimension_numbers = #tpu.dot_dimension_numbers<[1], [0], [0], [1], [0, 0, 1, 1], [], []>} : vector<64x32xf32>, vector<32x8xf32>, vector<64x8xf32> -> vector<64x8xf32>
    %c0_11 = arith.constant 0 : index
    %c0_12 = arith.constant 0 : index
    %8 = vector.load %arg4[%c0_11, %c0_12] : memref<32x8xf32, #tpu.memory_space<vmem>>, vector<32x8xf32>
    %cst_13 = arith.constant dense<0.000000e+00> : vector<16x8xf32>
    %9 = tpu.matmul %5, %8, %cst_13 {dimension_numbers = #tpu.dot_dimension_numbers<[1], [0], [0], [1], [0, 0, 1, 1], [], []>} : vector<16x32xf32>, vector<32x8xf32>, vector<16x8xf32> -> vector<16x8xf32>
    %10 = vector.extract_strided_slice %9 {offsets = [0, 4], sizes = [16, 4], strides = [1, 1]} : vector<16x8xf32> to vector<16x4xf32>
    %11 = vector.extract_strided_slice %7 {offsets = [0, 0], sizes = [64, 4], strides = [1, 1]} : vector<64x8xf32> to vector<64x4xf32>
    %12 = tpu.transpose %11, [1, 0] : vector<64x4xf32> -> vector<4x64xf32>
    %c0_14 = arith.constant 0 : index
    %c0_15 = arith.constant 0 : index
    %13 = vector.load %arg6[%c0_14, %c0_15] : memref<16x64xbf16, #tpu.memory_space<vmem>>, vector<16x64xbf16>
    %14 = arith.extf %13 : vector<16x64xbf16> to vector<16x64xf32>
    %15 = arith.truncf %2 : vector<64x32xf32> to vector<64x32xbf16>
    %16 = vector.extract_strided_slice %10 {offsets = [0, 0], sizes = [16, 1], strides = [1, 1]} : vector<16x4xf32> to vector<16x1xf32>
    %17 = vector.extract_strided_slice %12 {offsets = [0, 0], sizes = [1, 64], strides = [1, 1]} : vector<4x64xf32> to vector<1x64xf32>
    %18 = vector.broadcast %16 : vector<16x1xf32> to vector<16x64xf32>
    %19 = vector.broadcast %17 : vector<1x64xf32> to vector<16x64xf32>
    %20 = arith.addf %18, %19 : vector<16x64xf32>
    %cst_16 = arith.constant 0.000000e+00 : f32
    %21 = vector.broadcast %cst_16 : f32 to vector<16x64xf32>
    %22 = arith.cmpf ogt, %20, %21 : vector<16x64xf32>
    %cst_17 = arith.constant 2.000000e-01 : f32
    %23 = vector.broadcast %cst_17 : f32 to vector<16x64xf32>
    %24 = arith.mulf %23, %20 : vector<16x64xf32>
    %25 = arith.select %22, %20, %24 : vector<16x64xi1>, vector<16x64xf32>
    %26 = arith.addf %25, %14 : vector<16x64xf32>
    %cst_18 = arith.constant dense<0xFF800000> : vector<16xf32>
    %27 = vector.multi_reduction <maximumf>, %26, %cst_18 [1] : vector<16x64xf32> to vector<16xf32>
    %28 = vector.shape_cast %27 : vector<16xf32> to vector<16x1xf32>
    %29 = vector.broadcast %28 : vector<16x1xf32> to vector<16x64xf32>
    %30 = arith.subf %26, %29 : vector<16x64xf32>
    %31 = math.exp %30 : vector<16x64xf32>
    %cst_19 = arith.constant dense<0.000000e+00> : vector<16xf32>
    %32 = vector.multi_reduction <add>, %31, %cst_19 [1] : vector<16x64xf32> to vector<16xf32>
    %33 = vector.shape_cast %32 : vector<16xf32> to vector<16x1xf32>
    %34 = arith.truncf %31 : vector<16x64xf32> to vector<16x64xbf16>
    %35 = vector.extract_strided_slice %15 {offsets = [0, 0], sizes = [64, 8], strides = [1, 1]} : vector<64x32xbf16> to vector<64x8xbf16>
    %cst_20 = arith.constant dense<0.000000e+00> : vector<16x8xf32>
    %36 = tpu.matmul %34, %35, %cst_20 {dimension_numbers = #tpu.dot_dimension_numbers<[1], [0], [0], [1], [0, 0, 1, 1], [], []>} : vector<16x64xbf16>, vector<64x8xbf16>, vector<16x8xf32> -> vector<16x8xf32>
    %37 = tpu.reciprocal %33 {approx = true} : vector<16x1xf32> -> vector<16x1xf32>
    %38 = vector.broadcast %37 : vector<16x1xf32> to vector<16x8xf32>
    %39 = arith.mulf %36, %38 : vector<16x8xf32>
    %40 = vector.extract_strided_slice %10 {offsets = [0, 1], sizes = [16, 1], strides = [1, 1]} : vector<16x4xf32> to vector<16x1xf32>
    %41 = vector.extract_strided_slice %12 {offsets = [1, 0], sizes = [1, 64], strides = [1, 1]} : vector<4x64xf32> to vector<1x64xf32>
    %42 = vector.broadcast %40 : vector<16x1xf32> to vector<16x64xf32>
    %43 = vector.broadcast %41 : vector<1x64xf32> to vector<16x64xf32>
    %44 = arith.addf %42, %43 : vector<16x64xf32>
    %cst_21 = arith.constant 0.000000e+00 : f32
    %45 = vector.broadcast %cst_21 : f32 to vector<16x64xf32>
    %46 = arith.cmpf ogt, %44, %45 : vector<16x64xf32>
    %cst_22 = arith.constant 2.000000e-01 : f32
    %47 = vector.broadcast %cst_22 : f32 to vector<16x64xf32>
    %48 = arith.mulf %47, %44 : vector<16x64xf32>
    %49 = arith.select %46, %44, %48 : vector<16x64xi1>, vector<16x64xf32>
    %50 = arith.addf %49, %14 : vector<16x64xf32>
    %cst_23 = arith.constant dense<0xFF800000> : vector<16xf32>
    %51 = vector.multi_reduction <maximumf>, %50, %cst_23 [1] : vector<16x64xf32> to vector<16xf32>
    %52 = vector.shape_cast %51 : vector<16xf32> to vector<16x1xf32>
    %53 = vector.broadcast %52 : vector<16x1xf32> to vector<16x64xf32>
    %54 = arith.subf %50, %53 : vector<16x64xf32>
    %55 = math.exp %54 : vector<16x64xf32>
    %cst_24 = arith.constant dense<0.000000e+00> : vector<16xf32>
    %56 = vector.multi_reduction <add>, %55, %cst_24 [1] : vector<16x64xf32> to vector<16xf32>
    %57 = vector.shape_cast %56 : vector<16xf32> to vector<16x1xf32>
    %58 = arith.truncf %55 : vector<16x64xf32> to vector<16x64xbf16>
    %59 = vector.extract_strided_slice %15 {offsets = [0, 8], sizes = [64, 8], strides = [1, 1]} : vector<64x32xbf16> to vector<64x8xbf16>
    %cst_25 = arith.constant dense<0.000000e+00> : vector<16x8xf32>
    %60 = tpu.matmul %58, %59, %cst_25 {dimension_numbers = #tpu.dot_dimension_numbers<[1], [0], [0], [1], [0, 0, 1, 1], [], []>} : vector<16x64xbf16>, vector<64x8xbf16>, vector<16x8xf32> -> vector<16x8xf32>
    %61 = tpu.reciprocal %57 {approx = true} : vector<16x1xf32> -> vector<16x1xf32>
    %62 = vector.broadcast %61 : vector<16x1xf32> to vector<16x8xf32>
    %63 = arith.mulf %60, %62 : vector<16x8xf32>
    %64 = vector.extract_strided_slice %10 {offsets = [0, 2], sizes = [16, 1], strides = [1, 1]} : vector<16x4xf32> to vector<16x1xf32>
    %65 = vector.extract_strided_slice %12 {offsets = [2, 0], sizes = [1, 64], strides = [1, 1]} : vector<4x64xf32> to vector<1x64xf32>
    %66 = vector.broadcast %64 : vector<16x1xf32> to vector<16x64xf32>
    %67 = vector.broadcast %65 : vector<1x64xf32> to vector<16x64xf32>
    %68 = arith.addf %66, %67 : vector<16x64xf32>
    %cst_26 = arith.constant 0.000000e+00 : f32
    %69 = vector.broadcast %cst_26 : f32 to vector<16x64xf32>
    %70 = arith.cmpf ogt, %68, %69 : vector<16x64xf32>
    %cst_27 = arith.constant 2.000000e-01 : f32
    %71 = vector.broadcast %cst_27 : f32 to vector<16x64xf32>
    %72 = arith.mulf %71, %68 : vector<16x64xf32>
    %73 = arith.select %70, %68, %72 : vector<16x64xi1>, vector<16x64xf32>
    %74 = arith.addf %73, %14 : vector<16x64xf32>
    %cst_28 = arith.constant dense<0xFF800000> : vector<16xf32>
    %75 = vector.multi_reduction <maximumf>, %74, %cst_28 [1] : vector<16x64xf32> to vector<16xf32>
    %76 = vector.shape_cast %75 : vector<16xf32> to vector<16x1xf32>
    %77 = vector.broadcast %76 : vector<16x1xf32> to vector<16x64xf32>
    %78 = arith.subf %74, %77 : vector<16x64xf32>
    %79 = math.exp %78 : vector<16x64xf32>
    %cst_29 = arith.constant dense<0.000000e+00> : vector<16xf32>
    %80 = vector.multi_reduction <add>, %79, %cst_29 [1] : vector<16x64xf32> to vector<16xf32>
    %81 = vector.shape_cast %80 : vector<16xf32> to vector<16x1xf32>
    %82 = arith.truncf %79 : vector<16x64xf32> to vector<16x64xbf16>
    %83 = vector.extract_strided_slice %15 {offsets = [0, 16], sizes = [64, 8], strides = [1, 1]} : vector<64x32xbf16> to vector<64x8xbf16>
    %cst_30 = arith.constant dense<0.000000e+00> : vector<16x8xf32>
    %84 = tpu.matmul %82, %83, %cst_30 {dimension_numbers = #tpu.dot_dimension_numbers<[1], [0], [0], [1], [0, 0, 1, 1], [], []>} : vector<16x64xbf16>, vector<64x8xbf16>, vector<16x8xf32> -> vector<16x8xf32>
    %85 = tpu.reciprocal %81 {approx = true} : vector<16x1xf32> -> vector<16x1xf32>
    %86 = vector.broadcast %85 : vector<16x1xf32> to vector<16x8xf32>
    %87 = arith.mulf %84, %86 : vector<16x8xf32>
    %88 = vector.extract_strided_slice %10 {offsets = [0, 3], sizes = [16, 1], strides = [1, 1]} : vector<16x4xf32> to vector<16x1xf32>
    %89 = vector.extract_strided_slice %12 {offsets = [3, 0], sizes = [1, 64], strides = [1, 1]} : vector<4x64xf32> to vector<1x64xf32>
    %90 = vector.broadcast %88 : vector<16x1xf32> to vector<16x64xf32>
    %91 = vector.broadcast %89 : vector<1x64xf32> to vector<16x64xf32>
    %92 = arith.addf %90, %91 : vector<16x64xf32>
    %cst_31 = arith.constant 0.000000e+00 : f32
    %93 = vector.broadcast %cst_31 : f32 to vector<16x64xf32>
    %94 = arith.cmpf ogt, %92, %93 : vector<16x64xf32>
    %cst_32 = arith.constant 2.000000e-01 : f32
    %95 = vector.broadcast %cst_32 : f32 to vector<16x64xf32>
    %96 = arith.mulf %95, %92 : vector<16x64xf32>
    %97 = arith.select %94, %92, %96 : vector<16x64xi1>, vector<16x64xf32>
    %98 = arith.addf %97, %14 : vector<16x64xf32>
    %cst_33 = arith.constant dense<0xFF800000> : vector<16xf32>
    %99 = vector.multi_reduction <maximumf>, %98, %cst_33 [1] : vector<16x64xf32> to vector<16xf32>
    %100 = vector.shape_cast %99 : vector<16xf32> to vector<16x1xf32>
    %101 = vector.broadcast %100 : vector<16x1xf32> to vector<16x64xf32>
    %102 = arith.subf %98, %101 : vector<16x64xf32>
    %103 = math.exp %102 : vector<16x64xf32>
    %cst_34 = arith.constant dense<0.000000e+00> : vector<16xf32>
    %104 = vector.multi_reduction <add>, %103, %cst_34 [1] : vector<16x64xf32> to vector<16xf32>
    %105 = vector.shape_cast %104 : vector<16xf32> to vector<16x1xf32>
    %106 = arith.truncf %103 : vector<16x64xf32> to vector<16x64xbf16>
    %107 = vector.extract_strided_slice %15 {offsets = [0, 24], sizes = [64, 8], strides = [1, 1]} : vector<64x32xbf16> to vector<64x8xbf16>
    %cst_35 = arith.constant dense<0.000000e+00> : vector<16x8xf32>
    %108 = tpu.matmul %106, %107, %cst_35 {dimension_numbers = #tpu.dot_dimension_numbers<[1], [0], [0], [1], [0, 0, 1, 1], [], []>} : vector<16x64xbf16>, vector<64x8xbf16>, vector<16x8xf32> -> vector<16x8xf32>
    %109 = tpu.reciprocal %105 {approx = true} : vector<16x1xf32> -> vector<16x1xf32>
    %110 = vector.broadcast %109 : vector<16x1xf32> to vector<16x8xf32>
    %111 = arith.mulf %108, %110 : vector<16x8xf32>
    %112 = tpu.concatenate %39, %63, %87, %111 in 1 : vector<16x8xf32>, vector<16x8xf32>, vector<16x8xf32>, vector<16x8xf32> -> vector<16x32xf32>
    %c0_36 = arith.constant 0 : index
    %c0_37 = arith.constant 0 : index
    %113 = vector.load %arg5[%c0_36, %c0_37] : memref<1x32xf32, #tpu.memory_space<vmem>>, vector<1x32xf32>
    %114 = vector.broadcast %113 : vector<1x32xf32> to vector<16x32xf32>
    %115 = arith.addf %112, %114 : vector<16x32xf32>
    %cst_38 = arith.constant 0.000000e+00 : f32
    %116 = vector.broadcast %cst_38 : f32 to vector<16x32xf32>
    %117 = arith.maximumf %115, %116 : vector<16x32xf32>
    %cst_39 = arith.constant 0.000000e+00 : f32
    %118 = vector.broadcast %cst_39 : f32 to vector<16x96xf32>
    %119 = tpu.concatenate %117, %118 in 1 : vector<16x32xf32>, vector<16x96xf32> -> vector<16x128xf32>
    %c0_40 = arith.constant 0 : index
    %c0_41 = arith.constant 0 : index
    %120 = vector.load %arg7[%c0_40, %c0_41] : memref<16x128xf32, #tpu.memory_space<vmem>>, vector<16x128xf32>
    tpu.vector_store %arg7[%c0_40, %c0_41], %119 {strides = array<i32>} : memref<16x128xf32, #tpu.memory_space<vmem>>, vector<16x128xf32>,
    return
  }
  func.func @transform_0(%arg0: i32) -> (i32, i32) {
    %c0_i32 = arith.constant 0 : i32
    %c0_i32_0 = arith.constant 0 : i32
    %c0_i32_1 = arith.constant 0 : i32
    return %c0_i32, %c0_i32_0 : i32, i32
  }
  func.func @transform_1(%arg0: i32) -> (i32, i32) {
    %c0_i32 = arith.constant 0 : i32
    %c0_i32_0 = arith.constant 0 : i32
    return %arg0, %c0_i32 : i32, i32
  }
  func.func @transform_2(%arg0: i32) -> (i32, i32) {
    %c0_i32 = arith.constant 0 : i32
    %c0_i32_0 = arith.constant 0 : i32
    %c0_i32_1 = arith.constant 0 : i32
    return %c0_i32, %c0_i32_0 : i32, i32
  }
  func.func @transform_3(%arg0: i32) -> (i32, i32) {
    %c0_i32 = arith.constant 0 : i32
    %c0_i32_0 = arith.constant 0 : i32
    %c0_i32_1 = arith.constant 0 : i32
    return %c0_i32, %c0_i32_0 : i32, i32
  }
  func.func @transform_4(%arg0: i32) -> (i32, i32) {
    %c0_i32 = arith.constant 0 : i32
    %c0_i32_0 = arith.constant 0 : i32
    %c0_i32_1 = arith.constant 0 : i32
    return %c0_i32, %c0_i32_0 : i32, i32
  }
  func.func @transform_5(%arg0: i32) -> (i32, i32) {
    %c0_i32 = arith.constant 0 : i32
    %c0_i32_0 = arith.constant 0 : i32
    return %arg0, %c0_i32 : i32, i32
  }
  func.func @transform_6(%arg0: i32) -> (i32, i32) {
    %c0_i32 = arith.constant 0 : i32
    %c0_i32_0 = arith.constant 0 : i32
    return %arg0, %c0_i32 : i32, i32
  }
}

</mosaic_0001>

<llo_original>
// kernel: tpu_custom_call.1
$region0: #{tpu_custom_call.1}
  #allocation0 [shape = 'u32[]', space=smem, size = 0x4, offset = 0x4, fixed_abs, tag = 'smem constant byte address 0x4 - core index']
  #allocation1 [shape = 'u32[144,128]{1,0:T(1,128)}', space=vmem, size = 0x12000, scoped, tag = 'internal scratch']
  %s0 = inlined_call_operand.vmem [shape: f32[64,8], index: 0, kind: input, shape index: {}]
  %s1 = inlined_call_operand.vmem [shape: f32[64,8], index: 1, kind: input, shape index: {}]
  %s2 = inlined_call_operand.vmem [shape: f32[8,32], index: 2, kind: input, shape index: {}]
  %s3 = inlined_call_operand.vmem [shape: f32[32,8], index: 3, kind: input, shape index: {}]
  %s4 = inlined_call_operand.vmem [shape: f32[1,32], index: 4, kind: input, shape index: {}]
  %s5 = inlined_call_operand.vmem [shape: bf16[64,64], index: 5, kind: input, shape index: {}]
  %s6 = inlined_call_operand.hbm [shape: f32[64,128], index: 6, kind: output, shape index: {}]
  %s7 = sld [smem:[#allocation0]]
  $region57: #{tpu_custom_call.1} parent=0
    _
  %s9 = ssub.s32 1, %s7
  %s10 = scalar_select 0, %s9, %s7
  $region1: #{tpu_custom_call.1} parent=0
    #allocation2 [shape = 'u8[16384]{0}', space=vmem, size = 0x4000, scoped, tag = 'output window, operand 0']
    #allocation3 [shape = 's32[2]{0}', space=sflag, size = 0x8, scoped, tag = 'scoped memory for tpu_custom_call.1']
    %11 = vsyncpa [#allocation3], 0
    %s12 = scalar_lea.sflag [#allocation3], 1
    %13 = vsyncpa %s12, 0
    loop: start=0, step=1, limit=6
    $region2: #{tpu_custom_call.1} parent=1 // loop_pre_header
      _
    $region3: #{tpu_custom_call.1} parent=1 // loop_header
      %s15 = sphi 0, %s19
      %p16 = scmp.ge.s32.totalorder %s15, 6
      %s23 = sphi 0, %s23
      %s25 = sphi 0, %s23
      %s26 = sphi 0, %s25
      %s40 = sphi 0, %s26
      %s46 = sphi 0, %s48
      %s49 = sphi 0, %s46
      %s50 = sphi 0, %s49
      %s66 = sphi 0, %s50
      %s70 = sphi 0, %s70
      %s72 = sphi 0, %s70
      %s73 = sphi 0, %s72
      %s87 = sphi 0, %s73
      %s91 = sphi 0, %s91
      %s93 = sphi 0, %s91
      %s94 = sphi 0, %s93
      %s108 = sphi 0, %s94
      %s112 = sphi 0, %s112
      %s114 = sphi 0, %s112
      %s115 = sphi 0, %s114
      %s129 = sphi 0, %s115
      %s135 = sphi 0, %s137
      %s138 = sphi 0, %s135
      %s139 = sphi 0, %s138
      %s155 = sphi 0, %s139
      %s161 = sphi 0, %s163
      %s164 = sphi 0, %s161
      %s165 = sphi 0, %s164
      %s181 = sphi 0, %s165
    $region4: #{tpu_custom_call.1} parent=1 // loop_header_branch
      %18 = sbr.rel (%p16) target = $region8
    $region5: #{tpu_custom_call.1} parent=1 // loop_body
      %s20 = ssub.s32 %s15, 1
      %s21 = ssub.s32 %s15, 2
      %s22 = sadd.s32 %s15, 1
      %s24 = sadd.s32 %s23, 1
      %p27 = scmp.eq.s32.totalorder %s15, 3
      %p28 = scmp.ne.s32.totalorder %s23, %s25
      %p29 = scmp.eq.s32.totalorder %s15, 0
      %p30 = por %p28, %p29
      %p31 = scmp.ne.s32.totalorder %s23, %s25
      %p32 = scmp.eq.s32.totalorder %s20, 3
      %p33 = por %p31, %p32
      %p34 = scmp.ne.s32.totalorder %s25, %s26
      %p35 = scmp.eq.s32.totalorder %s20, 0
      %p36 = por %p34, %p35
      %p37 = scmp.ne.s32.totalorder %s25, %s26
      %p38 = scmp.eq.s32.totalorder %s21, 3
      %p39 = por %p37, %p38
      %p41 = scmp.ne.s32.totalorder %s26, %s40
      %p42 = scmp.eq.s32.totalorder %s21, 0
      %p43 = por %p41, %p42
      %s44 = ssub.s32 %s15, %s22
      %p45 = scmp.eq.s32.totalorder %s44, 0
      %s47 = sadd.s32 %s46, 1
      %s48 = scalar_select %p45, %s46, %s47
      %p51 = pneg %p45
      %p52 = scmp.eq.s32.totalorder %s15, 3
      %p53 = por %p51, %p52
      %p54 = scmp.ne.s32.totalorder %s46, %s49
      %p55 = scmp.eq.s32.totalorder %s15, 0
      %p56 = por %p54, %p55
      %p57 = scmp.ne.s32.totalorder %s46, %s49
      %p58 = scmp.eq.s32.totalorder %s20, 3
      %p59 = por %p57, %p58
      %p60 = scmp.ne.s32.totalorder %s49, %s50
      %p61 = scmp.eq.s32.totalorder %s20, 0
      %p62 = por %p60, %p61
      %p63 = scmp.ne.s32.totalorder %s49, %s50
      %p64 = scmp.eq.s32.totalorder %s21, 3
      %p65 = por %p63, %p64
      %p67 = scmp.ne.s32.totalorder %s50, %s66
      %p68 = scmp.eq.s32.totalorder %s21, 0
      %p69 = por %p67, %p68
      %s71 = sadd.s32 %s70, 1
      %p74 = scmp.eq.s32.totalorder %s15, 3
      %p75 = scmp.ne.s32.totalorder %s70, %s72
      %p76 = scmp.eq.s32.totalorder %s15, 0
      %p77 = por %p75, %p76
      %p78 = scmp.ne.s32.totalorder %s70, %s72
      %p79 = scmp.eq.s32.totalorder %s20, 3
      %p80 = por %p78, %p79
      %p81 = scmp.ne.s32.totalorder %s72, %s73
      %p82 = scmp.eq.s32.totalorder %s20, 0
      %p83 = por %p81, %p82
      %p84 = scmp.ne.s32.totalorder %s72, %s73
      %p85 = scmp.eq.s32.totalorder %s21, 3
      %p86 = por %p84, %p85
      %p88 = scmp.ne.s32.totalorder %s73, %s87
      %p89 = scmp.eq.s32.totalorder %s21, 0
      %p90 = por %p88, %p89
      %s92 = sadd.s32 %s91, 1
      %p95 = scmp.eq.s32.totalorder %s15, 3
      %p96 = scmp.ne.s32.totalorder %s91, %s93
      %p97 = scmp.eq.s32.totalorder %s15, 0
      %p98 = por %p96, %p97
      %p99 = scmp.ne.s32.totalorder %s91, %s93
      %p100 = scmp.eq.s32.totalorder %s20, 3
      %p101 = por %p99, %p100
      %p102 = scmp.ne.s32.totalorder %s93, %s94
      %p103 = scmp.eq.s32.totalorder %s20, 0
      %p104 = por %p102, %p103
      %p105 = scmp.ne.s32.totalorder %s93, %s94
      %p106 = scmp.eq.s32.totalorder %s21, 3
      %p107 = por %p105, %p106
      %p109 = scmp.ne.s32.totalorder %s94, %s108
      %p110 = scmp.eq.s32.totalorder %s21, 0
      %p111 = por %p109, %p110
      %s113 = sadd.s32 %s112, 1
      %p116 = scmp.eq.s32.totalorder %s15, 3
      %p117 = scmp.ne.s32.totalorder %s112, %s114
      %p118 = scmp.eq.s32.totalorder %s15, 0
      %p119 = por %p117, %p118
      %p120 = scmp.ne.s32.totalorder %s112, %s114
      %p121 = scmp.eq.s32.totalorder %s20, 3
      %p122 = por %p120, %p121
      %p123 = scmp.ne.s32.totalorder %s114, %s115
      %p124 = scmp.eq.s32.totalorder %s20, 0
      %p125 = por %p123, %p124
      %p126 = scmp.ne.s32.totalorder %s114, %s115
      %p127 = scmp.eq.s32.totalorder %s21, 3
      %p128 = por %p126, %p127
      %p130 = scmp.ne.s32.totalorder %s115, %s129
      %p131 = scmp.eq.s32.totalorder %s21, 0
      %p132 = por %p130, %p131
      %s133 = ssub.s32 %s15, %s22
      %p134 = scmp.eq.s32.totalorder %s133, 0
      %s136 = sadd.s32 %s135, 1
      %s137 = scalar_select %p134, %s135, %s136
      %p140 = pneg %p134
      %p141 = scmp.eq.s32.totalorder %s15, 3
      %p142 = por %p140, %p141
      %p143 = scmp.ne.s32.totalorder %s135, %s138
      %p144 = scmp.eq.s32.totalorder %s15, 0
      %p145 = por %p143, %p144
      %p146 = scmp.ne.s32.totalorder %s135, %s138
      %p147 = scmp.eq.s32.totalorder %s20, 3
      %p148 = por %p146, %p147
      %p149 = scmp.ne.s32.totalorder %s138, %s139
      %p150 = scmp.eq.s32.totalorder %s20, 0
      %p151 = por %p149, %p150
      %p152 = scmp.ne.s32.totalorder %s138, %s139
      %p153 = scmp.eq.s32.totalorder %s21, 3
      %p154 = por %p152, %p153
      %p156 = scmp.ne.s32.totalorder %s139, %s155
      %p157 = scmp.eq.s32.totalorder %s21, 0
      %p158 = por %p156, %p157
      %s159 = ssub.s32 %s15, %s22
      %p160 = scmp.eq.s32.totalorder %s159, 0
      %s162 = sadd.s32 %s161, 1
      %s163 = scalar_select %p160, %s161, %s162
      %p166 = pneg %p160
      %p167 = scmp.eq.s32.totalorder %s15, 3
      %p168 = por %p166, %p167
      %p169 = scmp.ne.s32.totalorder %s161, %s164
      %p170 = scmp.eq.s32.totalorder %s15, 0
      %p171 = por %p169, %p170
      %p172 = scmp.ne.s32.totalorder %s161, %s164
      %p173 = scmp.eq.s32.totalorder %s20, 3
      %p174 = por %p172, %p173
      %p175 = scmp.ne.s32.totalorder %s164, %s165
      %p176 = scmp.eq.s32.totalorder %s20, 0
      %p177 = por %p175, %p176
      %p178 = scmp.ne.s32.totalorder %s164, %s165
      %p179 = scmp.eq.s32.totalorder %s21, 3
      %p180 = por %p178, %p179
      %p182 = scmp.ne.s32.totalorder %s165, %s181
      %p183 = scmp.eq.s32.totalorder %s21, 0
      %p184 = por %p182, %p183
      %p185 = scmp.le.s32.totalorder 1, %s15
      %p186 = scmp.lt.s32.totalorder %s15, 5
      %p187 = pnand %p185, %p186
      %p188 = pneg %p187
      // Predicated region
      $region9: #{tpu_custom_call.1} parent=5 // pred_check
        _
      $region10: #{tpu_custom_call.1} parent=5 // pred_check_branch
        %190 = sbr.rel (%p187) target = $region12
      $region11: #{tpu_custom_call.1} parent=5 // pred_region
        %s191 = ssub.s32 %s15, 1
        // Predicated region
        $region13: #{tpu_custom_call.1} parent=11 // pred_check
          %p192 = pneg %p36
        $region14: #{tpu_custom_call.1} parent=11 // pred_check_branch
          %194 = sbr.rel (%p192) target = $region16
        $region15: #{tpu_custom_call.1} parent=11 // pred_region
          _
        $region16: #{tpu_custom_call.1} parent=11 // pred_fallthru
          _
        // Predicated region
        $region17: #{tpu_custom_call.1} parent=11 // pred_check
          %p195 = pneg %p83
        $region18: #{tpu_custom_call.1} parent=11 // pred_check_branch
          %197 = sbr.rel (%p195) target = $region20
        $region19: #{tpu_custom_call.1} parent=11 // pred_region
          _
        $region20: #{tpu_custom_call.1} parent=11 // pred_fallthru
          _
        // Predicated region
        $region21: #{tpu_custom_call.1} parent=11 // pred_check
          %p198 = pneg %p104
        $region22: #{tpu_custom_call.1} parent=11 // pred_check_branch
          %200 = sbr.rel (%p198) target = $region24
        $region23: #{tpu_custom_call.1} parent=11 // pred_region
          _
        $region24: #{tpu_custom_call.1} parent=11 // pred_fallthru
          _
        // Predicated region
        $region25: #{tpu_custom_call.1} parent=11 // pred_check
          %p201 = pneg %p125
        $region26: #{tpu_custom_call.1} parent=11 // pred_check_branch
          %203 = sbr.rel (%p201) target = $region28
        $region27: #{tpu_custom_call.1} parent=11 // pred_region
          _
        $region28: #{tpu_custom_call.1} parent=11 // pred_fallthru
          _
      $region12: #{tpu_custom_call.1} parent=5 // pred_fallthru
        _
      %p204 = scmp.lt.s32.totalorder %s15, 4
      // Predicated region
      $region29: #{tpu_custom_call.1} parent=5 // pred_check
        %p205 = pneg %p204
      $region30: #{tpu_custom_call.1} parent=5 // pred_check_branch
        %207 = sbr.rel (%p205) target = $region32
      $region31: #{tpu_custom_call.1} parent=5 // pred_region
        // Predicated region
        $region33: #{tpu_custom_call.1} parent=31 // pred_check
          %p208 = pneg %p56
        $region34: #{tpu_custom_call.1} parent=31 // pred_check_branch
          %210 = sbr.rel (%p208) target = $region36
        $region35: #{tpu_custom_call.1} parent=31 // pred_region
          %s211 = smul.u32 2, %s15
          %p212 = scmp.lt.s32.totalorder %s211, 7
          %s213 = scalar_select %p212, %s211, 7
          %s214 = smul.addr %s213, 8
          %s215 = scalar_lea.vmem %s1, %s214
          %s216 = smul.u32 2, %s15
        $region36: #{tpu_custom_call.1} parent=31 // pred_fallthru
          _
        // Predicated region
        $region37: #{tpu_custom_call.1} parent=31 // pred_check
          %p217 = pneg %p145
        $region38: #{tpu_custom_call.1} parent=31 // pred_check_branch
          %219 = sbr.rel (%p217) target = $region40
        $region39: #{tpu_custom_call.1} parent=31 // pred_region
          %s220 = smul.u32 2, %s15
          %p221 = scmp.lt.s32.totalorder %s220, 7
          %s222 = scalar_select %p221, %s220, 7
          %s223 = smul.addr %s222, 4
          %s224 = scalar_lea.vmem %s5, %s223
          %s225 = smul.u32 2, %s15
        $region40: #{tpu_custom_call.1} parent=31 // pred_fallthru
          _
      $region32: #{tpu_custom_call.1} parent=5 // pred_fallthru
        _
      %p226 = scmp.le.s32.totalorder 1, %s15
      %p227 = scmp.lt.s32.totalorder %s15, 5
      %p228 = pnand %p226, %p227
      %p229 = pneg %p228
      // Predicated region
      $region41: #{tpu_custom_call.1} parent=5 // pred_check
        _
      $region42: #{tpu_custom_call.1} parent=5 // pred_check_branch
        %231 = sbr.rel (%p228) target = $region44
      $region43: #{tpu_custom_call.1} parent=5 // pred_region
        %s232 = ssub.s32 %s15, 1
        %p233 = pneg %p36
        %p234 = pneg %p33
        %s235 = smul.u32 2, %s20
        %p236 = scmp.lt.s32.totalorder %s235, 7
        %s237 = scalar_select %p236, %s235, 7
        %s238 = smul.addr %s237, 8
        %s239 = scalar_lea.vmem %s1, %s238
        %p240 = pneg %p62
        %p241 = pneg %p59
        %p242 = pneg %p83
        %p243 = pneg %p80
        %p244 = pneg %p104
        %p245 = pneg %p101
        %p246 = pneg %p125
        %p247 = pneg %p122
        %s248 = smul.u32 2, %s20
        %p249 = scmp.lt.s32.totalorder %s248, 7
        %s250 = scalar_select %p249, %s248, 7
        %s251 = smul.addr %s250, 4
        %s252 = scalar_lea.vmem %s5, %s251
        %p253 = pneg %p151
        %p254 = pneg %p148
        %p255 = pneg %p177
        %p256 = pneg %p174
        %s257 = sand.u32 %s164, 1
        %s258 = scalar_lea.sflag [#allocation3], %s257
        %s259 = sand.u32 %s164, 1
        %s260 = smul.addr %s259, 16
        %s261 = scalar_lea.vmem [#allocation2], %s260
        %s262 = smul.u32 2, %s20
        %p263 = scmp.lt.s32.totalorder %s262, 7
        %s264 = scalar_select %p263, %s262, 7
        %s265 = smul.addr %s264, 8
        %s266 = scalar_lea.vmem %s1, %s265
        %s267 = smul.u32 2, %s20
        %s268 = smul.u32 2, %s20
        %p269 = scmp.lt.s32.totalorder %s268, 7
        %s270 = scalar_select %p269, %s268, 7
        %s271 = smul.addr %s270, 4
        %s272 = scalar_lea.vmem %s5, %s271
        %s273 = smul.u32 2, %s20
        %s274 = smul.u32 2, %s20
        %v276 = vld [vmem:[%s0] sm:$0xff]
        %v277 = vld [vmem:[%s0 + $0x8] sm:$0xff]
        %v278 = vld [vmem:[%s0 + $0x10] sm:$0xff]
        %v279 = vld [vmem:[%s0 + $0x18] sm:$0xff]
        %v280 = vld [vmem:[%s0 + $0x20] sm:$0xff]
        %v281 = vld [vmem:[%s0 + $0x28] sm:$0xff]
        %v282 = vld [vmem:[%s0 + $0x30] sm:$0xff]
        %v283 = vld [vmem:[%s0 + $0x38] sm:$0xff]
        %v284 = vld [vmem:[%s2] sm:$0xff]
        %vm285 = vcmask 64512
        %v287 = vsel %vm285, %v276, 0
        %v290 = vsel %vm285, %v277, 0
        %v293 = vsel %vm285, %v278, 0
        %v296 = vsel %vm285, %v279, 0
        %v299 = vsel %vm285, %v280, 0
        %v302 = vsel %vm285, %v281, 0
        %v305 = vsel %vm285, %v282, 0
        %v308 = vsel %vm285, %v283, 0
        %310 = vmatprep.subr.mxu0 0.0
        %311 = vmatpush1.msra.mxu0 %v284
        %312 = vmatprep.subr.mxu0 0.0
        %313 = vmatpush1.msra.mxu0 0.0
        %314 = vmatprep.subr.mxu0 0.0
        %315 = vmatpush1.msra.mxu0 0.0
        %316 = vmatprep.subr.mxu0 0.0
        %317 = vmatpush1.msra.mxu0 0.0
        %318 = vmatprep.subr.mxu0 0.0
        %319 = vmatpush1.msra.mxu0 0.0
        %320 = vmatprep.subr.mxu0 0.0
        %321 = vmatpush1.msra.mxu0 0.0
        %322 = vmatprep.subr.mxu0 0.0
        %323 = vmatpush1.msra.mxu0 0.0
        %324 = vmatprep.subr.mxu0 0.0
        %325 = vmatpush1.msra.mxu0 0.0
        %326 = vmatprep.subr.mxu0 0.0
        %327 = vmatpush1.msra.mxu0 0.0
        %328 = vmatprep.subr.mxu0 0.0
        %329 = vmatpush1.msra.mxu0 0.0
        %330 = vmatprep.subr.mxu0 0.0
        %331 = vmatpush1.msra.mxu0 0.0
        %332 = vmatprep.subr.mxu0 0.0
        %333 = vmatpush1.msra.mxu0 0.0
        %334 = vmatprep.subr.mxu0 0.0
        %335 = vmatpush1.msra.mxu0 0.0
        %336 = vmatprep.subr.mxu0 0.0
        %337 = vmatpush1.msra.mxu0 0.0
        %338 = vmatprep.subr.mxu0 0.0
        %339 = vmatpush1.msra.mxu0 0.0
        %340 = vmatprep.subr.mxu0 0.0
        %341 = vmatpush1.msra.mxu0 0.0
        %342 = vmatprep.subr.mxu0 0.0
        %343 = vmatpush1.msra.mxu0 0.0
        %344 = vmatprep.subr.mxu0 0.0
        %345 = vmatpush1.msra.mxu0 0.0
        %346 = vmatprep.subr.mxu0 0.0
        %347 = vmatpush1.msra.mxu0 0.0
        %348 = vmatprep.subr.mxu0 0.0
        %349 = vmatpush1.msra.mxu0 0.0
        %350 = vmatprep.subr.mxu0 0.0
        %351 = vmatpush1.msra.mxu0 0.0
        %352 = vmatprep.subr.mxu0 0.0
        %353 = vmatpush1.msra.mxu0 0.0
        %354 = vmatprep.subr.mxu0 0.0
        %355 = vmatpush1.msra.mxu0 0.0
        %356 = vmatprep.subr.mxu0 0.0
        %357 = vmatpush1.msra.mxu0 0.0
        %358 = vmatprep.subr.mxu0 0.0
        %359 = vmatpush1.msra.mxu0 0.0
        %360 = vmatprep.subr.mxu0 0.0
        %361 = vmatpush1.msra.mxu0 0.0
        %362 = vmatprep.subr.mxu0 0.0
        %363 = vmatpush1.msra.mxu0 0.0
        %364 = vmatprep.subr.mxu0 0.0
        %365 = vmatpush1.msra.mxu0 0.0
        %366 = vmatprep.subr.mxu0 0.0
        %367 = vmatpush1.msra.mxu0 0.0
        %368 = vmatprep.subr.mxu0 0.0
        %369 = vmatpush1.msra.mxu0 0.0
        %370 = vmatprep.subr.mxu0 0.0
        %371 = vmatpush1.msra.mxu0 0.0
        %372 = vmatprep.subr.mxu0 0.0
        %373 = vmatpush1.msra.mxu0 0.0
        %374 = vmatprep.mubr.f32.mxu0 0.0
        %375 = vmatmul.mubr.f32.gmra.mrb[0].mxu0 %v287
        %v376 = vpop.f32.mrb[0].mxu0
        %v377 = vadd.f32 0.0, %v376
        %v378 = vpop.f32.mrb[0].mxu0
        %379 = vmatprep.mubr.f32.mxu0 0.0
        %380 = vmatmul.mubr.f32.gmra.mrb[0].mxu0 %v290
        %v381 = vpop.f32.mrb[0].mxu0
        %v382 = vadd.f32 0.0, %v381
        %v383 = vpop.f32.mrb[0].mxu0
        %384 = vmatprep.mubr.f32.mxu0 0.0
        %385 = vmatmul.mubr.f32.gmra.mrb[0].mxu0 %v293
        %v386 = vpop.f32.mrb[0].mxu0
        %v387 = vadd.f32 0.0, %v386
        %v388 = vpop.f32.mrb[0].mxu0
        %389 = vmatprep.mubr.f32.mxu0 0.0
        %390 = vmatmul.mubr.f32.gmra.mrb[0].mxu0 %v296
        %v391 = vpop.f32.mrb[0].mxu0
        %v392 = vadd.f32 0.0, %v391
        %v393 = vpop.f32.mrb[0].mxu0
        %394 = vmatprep.mubr.f32.mxu0 0.0
        %395 = vmatmul.mubr.f32.gmra.mrb[0].mxu0 %v299
        %v396 = vpop.f32.mrb[0].mxu0
        %v397 = vadd.f32 0.0, %v396
        %v398 = vpop.f32.mrb[0].mxu0
        %399 = vmatprep.mubr.f32.mxu0 0.0
        %400 = vmatmul.mubr.f32.gmra.mrb[0].mxu0 %v302
        %v401 = vpop.f32.mrb[0].mxu0
        %v402 = vadd.f32 0.0, %v401
        %v403 = vpop.f32.mrb[0].mxu0
        %404 = vmatprep.mubr.f32.mxu0 0.0
        %405 = vmatmul.mubr.f32.gmra.mrb[0].mxu0 %v305
        %v406 = vpop.f32.mrb[0].mxu0
        %v407 = vadd.f32 0.0, %v406
        %v408 = vpop.f32.mrb[0].mxu0
        %409 = vmatprep.mubr.f32.mxu0 0.0
        %410 = vmatmul.mubr.f32.gmra.mrb[0].mxu0 %v308
        %v411 = vpop.f32.mrb[0].mxu0
        %v412 = vadd.f32 0.0, %v411
        %v413 = vpop.f32.mrb[0].mxu0
        %414 = vdwg.mxu0
        %v415 = vld [vmem:[%s266] sm:$0xff]
        %v416 = vld [vmem:[%s266 + $0x8] sm:$0xff]
        %v418 = vsel %vm285, %v415, 0
        %v421 = vsel %vm285, %v416, 0
        %423 = vmatprep.subr.mxu0 0.0
        %424 = vmatpush1.msra.mxu0 %v284
        %425 = vmatprep.subr.mxu0 0.0
        %426 = vmatpush1.msra.mxu0 0.0
        %427 = vmatprep.subr.mxu0 0.0
        %428 = vmatpush1.msra.mxu0 0.0
        %429 = vmatprep.subr.mxu0 0.0
        %430 = vmatpush1.msra.mxu0 0.0
        %431 = vmatprep.subr.mxu0 0.0
        %432 = vmatpush1.msra.mxu0 0.0
        %433 = vmatprep.subr.mxu0 0.0
        %434 = vmatpush1.msra.mxu0 0.0
        %435 = vmatprep.subr.mxu0 0.0
        %436 = vmatpush1.msra.mxu0 0.0
        %437 = vmatprep.subr.mxu0 0.0
        %438 = vmatpush1.msra.mxu0 0.0
        %439 = vmatprep.subr.mxu0 0.0
        %440 = vmatpush1.msra.mxu0 0.0
        %441 = vmatprep.subr.mxu0 0.0
        %442 = vmatpush1.msra.mxu0 0.0
        %443 = vmatprep.subr.mxu0 0.0
        %444 = vmatpush1.msra.mxu0 0.0
        %445 = vmatprep.subr.mxu0 0.0
        %446 = vmatpush1.msra.mxu0 0.0
        %447 = vmatprep.subr.mxu0 0.0
        %448 = vmatpush1.msra.mxu0 0.0
        %449 = vmatprep.subr.mxu0 0.0
        %450 = vmatpush1.msra.mxu0 0.0
        %451 = vmatprep.subr.mxu0 0.0
        %452 = vmatpush1.msra.mxu0 0.0
        %453 = vmatprep.subr.mxu0 0.0
        %454 = vmatpush1.msra.mxu0 0.0
        %455 = vmatprep.subr.mxu0 0.0
        %456 = vmatpush1.msra.mxu0 0.0
        %457 = vmatprep.subr.mxu0 0.0
        %458 = vmatpush1.msra.mxu0 0.0
        %459 = vmatprep.subr.mxu0 0.0
        %460 = vmatpush1.msra.mxu0 0.0
        %461 = vmatprep.subr.mxu0 0.0
        %462 = vmatpush1.msra.mxu0 0.0
        %463 = vmatprep.subr.mxu0 0.0
        %464 = vmatpush1.msra.mxu0 0.0
        %465 = vmatprep.subr.mxu0 0.0
        %466 = vmatpush1.msra.mxu0 0.0
        %467 = vmatprep.subr.mxu0 0.0
        %468 = vmatpush1.msra.mxu0 0.0
        %469 = vmatprep.subr.mxu0 0.0
        %470 = vmatpush1.msra.mxu0 0.0
        %471 = vmatprep.subr.mxu0 0.0
        %472 = vmatpush1.msra.mxu0 0.0
        %473 = vmatprep.subr.mxu0 0.0
        %474 = vmatpush1.msra.mxu0 0.0
        %475 = vmatprep.subr.mxu0 0.0
        %476 = vmatpush1.msra.mxu0 0.0
        %477 = vmatprep.subr.mxu0 0.0
        %478 = vmatpush1.msra.mxu0 0.0
        %479 = vmatprep.subr.mxu0 0.0
        %480 = vmatpush1.msra.mxu0 0.0
        %481 = vmatprep.subr.mxu0 0.0
        %482 = vmatpush1.msra.mxu0 0.0
        %483 = vmatprep.subr.mxu0 0.0
        %484 = vmatpush1.msra.mxu0 0.0
        %485 = vmatprep.subr.mxu0 0.0
        %486 = vmatpush1.msra.mxu0 0.0
        %487 = vmatprep.mubr.f32.mxu0 0.0
        %488 = vmatmul.mubr.f32.gmra.mrb[0].mxu0 %v418
        %v489 = vpop.f32.mrb[0].mxu0
        %v490 = vadd.f32 0.0, %v489
        %v491 = vpop.f32.mrb[0].mxu0
        %492 = vmatprep.mubr.f32.mxu0 0.0
        %493 = vmatmul.mubr.f32.gmra.mrb[0].mxu0 %v421
        %v494 = vpop.f32.mrb[0].mxu0
        %v495 = vadd.f32 0.0, %v494
        %v496 = vpop.f32.mrb[0].mxu0
        %497 = vdwg.mxu0
        %v498 = vld [vmem:[%s3] sm:$0xff]
        %v499 = vld [vmem:[%s3 + $0x8] sm:$0xff]
        %v500 = vld [vmem:[%s3 + $0x10] sm:$0xff]
        %v501 = vld [vmem:[%s3 + $0x18] sm:$0xff]
        %vm502 = vcmask 261120
        %v504 = vsel %vm502, %v377, 0
        %v507 = vsel %vm502, %v382, 0
        %v510 = vsel %vm502, %v387, 0
        %v513 = vsel %vm502, %v392, 0
        %v516 = vsel %vm502, %v397, 0
        %v519 = vsel %vm502, %v402, 0
        %v522 = vsel %vm502, %v407, 0
        %v525 = vsel %vm502, %v412, 0
        %527 = vmatprep.subr.mxu0 0.0
        %528 = vmatpush1.msra.mxu0 %v498
        %529 = vmatprep.subr.mxu0 0.0
        %530 = vmatpush1.msra.mxu0 %v499
        %531 = vmatprep.subr.mxu0 0.0
        %532 = vmatpush1.msra.mxu0 %v500
        %533 = vmatprep.subr.mxu0 0.0
        %534 = vmatpush1.msra.mxu0 %v501
        %535 = vmatprep.subr.mxu0 0.0
        %536 = vmatpush1.msra.mxu0 0.0
        %537 = vmatprep.subr.mxu0 0.0
        %538 = vmatpush1.msra.mxu0 0.0
        %539 = vmatprep.subr.mxu0 0.0
        %540 = vmatpush1.msra.mxu0 0.0
        %541 = vmatprep.subr.mxu0 0.0
        %542 = vmatpush1.msra.mxu0 0.0
        %543 = vmatprep.subr.mxu0 0.0
        %544 = vmatpush1.msra.mxu0 0.0
        %545 = vmatprep.subr.mxu0 0.0
        %546 = vmatpush1.msra.mxu0 0.0
        %547 = vmatprep.subr.mxu0 0.0
        %548 = vmatpush1.msra.mxu0 0.0
        %549 = vmatprep.subr.mxu0 0.0
        %550 = vmatpush1.msra.mxu0 0.0
        %551 = vmatprep.subr.mxu0 0.0
        %552 = vmatpush1.msra.mxu0 0.0
        %553 = vmatprep.subr.mxu0 0.0
        %554 = vmatpush1.msra.mxu0 0.0
        %555 = vmatprep.subr.mxu0 0.0
        %556 = vmatpush1.msra.mxu0 0.0
        %557 = vmatprep.subr.mxu0 0.0
        %558 = vmatpush1.msra.mxu0 0.0
        %559 = vmatprep.subr.mxu0 0.0
        %560 = vmatpush1.msra.mxu0 0.0
        %561 = vmatprep.subr.mxu0 0.0
        %562 = vmatpush1.msra.mxu0 0.0
        %563 = vmatprep.subr.mxu0 0.0
        %564 = vmatpush1.msra.mxu0 0.0
        %565 = vmatprep.subr.mxu0 0.0
        %566 = vmatpush1.msra.mxu0 0.0
        %567 = vmatprep.subr.mxu0 0.0
        %568 = vmatpush1.msra.mxu0 0.0
        %569 = vmatprep.subr.mxu0 0.0
        %570 = vmatpush1.msra.mxu0 0.0
        %571 = vmatprep.subr.mxu0 0.0
        %572 = vmatpush1.msra.mxu0 0.0
        %573 = vmatprep.subr.mxu0 0.0
        %574 = vmatpush1.msra.mxu0 0.0
        %575 = vmatprep.subr.mxu0 0.0
        %576 = vmatpush1.msra.mxu0 0.0
        %577 = vmatprep.subr.mxu0 0.0
        %578 = vmatpush1.msra.mxu0 0.0
        %579 = vmatprep.subr.mxu0 0.0
        %580 = vmatpush1.msra.mxu0 0.0
        %581 = vmatprep.subr.mxu0 0.0
        %582 = vmatpush1.msra.mxu0 0.0
        %583 = vmatprep.subr.mxu0 0.0
        %584 = vmatpush1.msra.mxu0 0.0
        %585 = vmatprep.subr.mxu0 0.0
        %586 = vmatpush1.msra.mxu0 0.0
        %587 = vmatprep.subr.mxu0 0.0
        %588 = vmatpush1.msra.mxu0 0.0
        %589 = vmatprep.subr.mxu0 0.0
        %590 = vmatpush1.msra.mxu0 0.0
        %591 = vmatprep.mubr.f32.mxu0 0.0
        %592 = vmatmul.mubr.f32.gmra.mrb[0].mxu0 %v504
        %v593 = vpop.f32.mrb[0].mxu0
        %v594 = vadd.f32 0.0, %v593
        %v595 = vpop.f32.mrb[0].mxu0
        %596 = vmatprep.mubr.f32.mxu0 0.0
        %597 = vmatmul.mubr.f32.gmra.mrb[0].mxu0 %v507
        %v598 = vpop.f32.mrb[0].mxu0
        %v599 = vadd.f32 0.0, %v598
        %v600 = vpop.f32.mrb[0].mxu0
        %601 = vmatprep.mubr.f32.mxu0 0.0
        %602 = vmatmul.mubr.f32.gmra.mrb[0].mxu0 %v510
        %v603 = vpop.f32.mrb[0].mxu0
        %v604 = vadd.f32 0.0, %v603
        %v605 = vpop.f32.mrb[0].mxu0
        %606 = vmatprep.mubr.f32.mxu0 0.0
        %607 = vmatmul.mubr.f32.gmra.mrb[0].mxu0 %v513
        %v608 = vpop.f32.mrb[0].mxu0
        %v609 = vadd.f32 0.0, %v608
        %v610 = vpop.f32.mrb[0].mxu0
        %611 = vmatprep.mubr.f32.mxu0 0.0
        %612 = vmatmul.mubr.f32.gmra.mrb[0].mxu0 %v516
        %v613 = vpop.f32.mrb[0].mxu0
        %v614 = vadd.f32 0.0, %v613
        %v615 = vpop.f32.mrb[0].mxu0
        %616 = vmatprep.mubr.f32.mxu0 0.0
        %617 = vmatmul.mubr.f32.gmra.mrb[0].mxu0 %v519
        %v618 = vpop.f32.mrb[0].mxu0
        %v619 = vadd.f32 0.0, %v618
        %v620 = vpop.f32.mrb[0].mxu0
        %621 = vmatprep.mubr.f32.mxu0 0.0
        %622 = vmatmul.mubr.f32.gmra.mrb[0].mxu0 %v522
        %v623 = vpop.f32.mrb[0].mxu0
        %v624 = vadd.f32 0.0, %v623
        %v625 = vpop.f32.mrb[0].mxu0
        %626 = vmatprep.mubr.f32.mxu0 0.0
        %627 = vmatmul.mubr.f32.gmra.mrb[0].mxu0 %v525
        %v628 = vpop.f32.mrb[0].mxu0
        %v629 = vadd.f32 0.0, %v628
        %v630 = vpop.f32.mrb[0].mxu0
        %631 = vdwg.mxu0
        %v633 = vsel %vm502, %v490, 0
        %v636 = vsel %vm502, %v495, 0
        %638 = vmatprep.subr.mxu0 0.0
        %639 = vmatpush1.msra.mxu0 %v498
        %640 = vmatprep.subr.mxu0 0.0
        %641 = vmatpush1.msra.mxu0 %v499
        %642 = vmatprep.subr.mxu0 0.0
        %643 = vmatpush1.msra.mxu0 %v500
        %644 = vmatprep.subr.mxu0 0.0
        %645 = vmatpush1.msra.mxu0 %v501
        %646 = vmatprep.subr.mxu0 0.0
        %647 = vmatpush1.msra.mxu0 0.0
        %648 = vmatprep.subr.mxu0 0.0
        %649 = vmatpush1.msra.mxu0 0.0
        %650 = vmatprep.subr.mxu0 0.0
        %651 = vmatpush1.msra.mxu0 0.0
        %652 = vmatprep.subr.mxu0 0.0
        %653 = vmatpush1.msra.mxu0 0.0
        %654 = vmatprep.subr.mxu0 0.0
        %655 = vmatpush1.msra.mxu0 0.0
        %656 = vmatprep.subr.mxu0 0.0
        %657 = vmatpush1.msra.mxu0 0.0
        %658 = vmatprep.subr.mxu0 0.0
        %659 = vmatpush1.msra.mxu0 0.0
        %660 = vmatprep.subr.mxu0 0.0
        %661 = vmatpush1.msra.mxu0 0.0
        %662 = vmatprep.subr.mxu0 0.0
        %663 = vmatpush1.msra.mxu0 0.0
        %664 = vmatprep.subr.mxu0 0.0
        %665 = vmatpush1.msra.mxu0 0.0
        %666 = vmatprep.subr.mxu0 0.0
        %667 = vmatpush1.msra.mxu0 0.0
        %668 = vmatprep.subr.mxu0 0.0
        %669 = vmatpush1.msra.mxu0 0.0
        %670 = vmatprep.subr.mxu0 0.0
        %671 = vmatpush1.msra.mxu0 0.0
        %672 = vmatprep.subr.mxu0 0.0
        %673 = vmatpush1.msra.mxu0 0.0
        %674 = vmatprep.subr.mxu0 0.0
        %675 = vmatpush1.msra.mxu0 0.0
        %676 = vmatprep.subr.mxu0 0.0
        %677 = vmatpush1.msra.mxu0 0.0
        %678 = vmatprep.subr.mxu0 0.0
        %679 = vmatpush1.msra.mxu0 0.0
        %680 = vmatprep.subr.mxu0 0.0
        %681 = vmatpush1.msra.mxu0 0.0
        %682 = vmatprep.subr.mxu0 0.0
        %683 = vmatpush1.msra.mxu0 0.0
        %684 = vmatprep.subr.mxu0 0.0
        %685 = vmatpush1.msra.mxu0 0.0
        %686 = vmatprep.subr.mxu0 0.0
        %687 = vmatpush1.msra.mxu0 0.0
        %688 = vmatprep.subr.mxu0 0.0
        %689 = vmatpush1.msra.mxu0 0.0
        %690 = vmatprep.subr.mxu0 0.0
        %691 = vmatpush1.msra.mxu0 0.0
        %692 = vmatprep.subr.mxu0 0.0
        %693 = vmatpush1.msra.mxu0 0.0
        %694 = vmatprep.subr.mxu0 0.0
        %695 = vmatpush1.msra.mxu0 0.0
        %696 = vmatprep.subr.mxu0 0.0
        %697 = vmatpush1.msra.mxu0 0.0
        %698 = vmatprep.subr.mxu0 0.0
        %699 = vmatpush1.msra.mxu0 0.0
        %700 = vmatprep.subr.mxu0 0.0
        %701 = vmatpush1.msra.mxu0 0.0
        %702 = vmatprep.mubr.f32.mxu0 0.0
        %703 = vmatmul.mubr.f32.gmra.mrb[0].mxu0 %v633
        %v704 = vpop.f32.mrb[0].mxu0
        %v705 = vadd.f32 0.0, %v704
        %v706 = vpop.f32.mrb[0].mxu0
        %707 = vmatprep.mubr.f32.mxu0 0.0
        %708 = vmatmul.mubr.f32.gmra.mrb[0].mxu0 %v636
        %v709 = vpop.f32.mrb[0].mxu0
        %v710 = vadd.f32 0.0, %v709
        %v711 = vpop.f32.mrb[0].mxu0
        %712 = vdwg.mxu0
        %713 = vxpose.xlu0.b32.start [1/16] %v594, 128
        %714 = vxpose.xlu0.b32.cont [2/16] %v599, 128
        %715 = vxpose.xlu0.b32.cont [3/16] %v604, 128
        %716 = vxpose.xlu0.b32.cont [4/16] %v609, 128
        %717 = vxpose.xlu0.b32.cont [5/16] %v614, 128
        %718 = vxpose.xlu0.b32.cont [6/16] %v619, 128
        %719 = vxpose.xlu0.b32.cont [7/16] %v624, 128
        %720 = vxpose.xlu0.b32.cont [8/16] %v629, 128
        %721 = vxpose.xlu0.b32.cont [9/16] 0.0, 128
        %722 = vxpose.xlu0.b32.cont [10/16] 0.0, 128
        %723 = vxpose.xlu0.b32.cont [11/16] 0.0, 128
        %724 = vxpose.xlu0.b32.cont [12/16] 0.0, 128
        %725 = vxpose.xlu0.b32.cont [13/16] 0.0, 128
        %726 = vxpose.xlu0.b32.cont [14/16] 0.0, 128
        %727 = vxpose.xlu0.b32.cont [15/16] 0.0, 128
        %728 = vxpose.xlu0.b32.end [16/16] 0.0, 128
        %v729 = vpop.trf.xlu0
        %v730 = vpop.trf.xlu0
        %v731 = vpop.trf.xlu0
        %v732 = vpop.trf.xlu0
        %v733 = vpop.trf.xlu0
        %v734 = vpop.trf.xlu0
        %v735 = vpop.trf.xlu0
        %v736 = vpop.trf.xlu0
        %v737 = vpop.trf.xlu0
        %v738 = vpop.trf.xlu0
        %v739 = vpop.trf.xlu0
        %v740 = vpop.trf.xlu0
        %v741 = vpop.trf.xlu0
        %v742 = vpop.trf.xlu0
        %v743 = vpop.trf.xlu0
        %v744 = vpop.trf.xlu0
        %v745 = vld [vmem:[%s272] sm:$0xf]
        %v746 = vld [vmem:[%s272 + $0x4] sm:$0xf]
        %v747 = vunpack.c.l.bf16 %v745
        %v748 = vunpack.c.l.bf16 %v746
        %v749 = vpack.c.bf16 %v382, %v377
        %v750 = vpack.c.bf16 %v392, %v387
        %v751 = vpack.c.bf16 %v402, %v397
        %v752 = vpack.c.bf16 %v412, %v407
        %754 = vset.pattern.permute.xlu0 4
        %755 = vperm.xlu0 %754, %v705
        %v756 = vpop.permute.xlu0 %755
        %759 = vset.pattern.permute.xlu0 4
        %760 = vperm.xlu0 %759, %v710
        %v761 = vpop.permute.xlu0 %760
        %v763 = vlaneseq
        %v764 = vshrl.u32 %v763, 7
        %v765 = vsub.s32 0, %v764
        %v766 = vrot.slane %v729, %v765
        %v767 = vadd.f32 %v756, %v766
        %v768 = vadd.f32 %v761, %v766
        %vm769 = vcmp.gt.f32.partialorder %v767, 0.0
        %vm770 = vcmp.gt.f32.partialorder %v768, 0.0
        %v771 = vmul.f32 %v767, 0.2
        %v772 = vmul.f32 %v768, 0.2
        %v773 = vsel %vm769, %v767, %v771
        %v774 = vsel %vm770, %v768, %v772
        %v775 = vadd.f32 %v773, %v747
        %v776 = vadd.f32 %v774, %v748
        %vm777 = vcmask 523264
        %v778 = vsel %vm777, %v775, -inf
        %779 = vmax.xlane.f32.xlu0 %v778
        %v780 = vpop.xlane.xlu0 %779
        %v781 = vsel %vm777, %v776, -inf
        %782 = vmax.xlane.f32.xlu0 %v781
        %v783 = vpop.xlane.xlu0 %782
        %v784 = vsub.f32 %v775, %v780
        %v785 = vsub.f32 %v776, %v783
        %v786 = vmul.f32 %v784, 1.442695
        %v787 = vpow.pop %v786
        %v788 = vmul.f32 %v785, 1.442695
        %v789 = vpow.pop %v788
        %v790 = vsel %vm777, %v787, 0.0
        %791 = vadd.xlane.f32.xlu0 %v790
        %v792 = vpop.xlane.xlu0 %791
        %v793 = vsel %vm777, %v789, 0.0
        %794 = vadd.xlane.f32.xlu0 %v793
        %v795 = vpop.xlane.xlu0 %794
        %v796 = vpack.c.bf16 %v789, %v787
        %v798 = vsel %vm777, %v796, 0
        %800 = vmatprep.subr.bf16.mxu0 0
        %801 = vmatpush1.bf16.msra.mxu0 %v749
        %802 = vmatprep.subr.bf16.mxu0 0
        %803 = vmatpush1.bf16.msra.mxu0 %v750
        %804 = vmatprep.subr.bf16.mxu0 0
        %805 = vmatpush1.bf16.msra.mxu0 %v751
        %806 = vmatprep.subr.bf16.mxu0 0
        %807 = vmatpush1.bf16.msra.mxu0 %v752
        %808 = vmatprep.subr.bf16.mxu0 0
        %809 = vmatpush1.bf16.msra.mxu0 0
        %810 = vmatprep.subr.bf16.mxu0 0
        %811 = vmatpush1.bf16.msra.mxu0 0
        %812 = vmatprep.subr.bf16.mxu0 0
        %813 = vmatpush1.bf16.msra.mxu0 0
        %814 = vmatprep.subr.bf16.mxu0 0
        %815 = vmatpush1.bf16.msra.mxu0 0
        %816 = vmatprep.subr.bf16.mxu0 0
        %817 = vmatpush1.bf16.msra.mxu0 0
        %818 = vmatprep.subr.bf16.mxu0 0
        %819 = vmatpush1.bf16.msra.mxu0 0
        %820 = vmatprep.subr.bf16.mxu0 0
        %821 = vmatpush1.bf16.msra.mxu0 0
        %822 = vmatprep.subr.bf16.mxu0 0
        %823 = vmatpush1.bf16.msra.mxu0 0
        %824 = vmatprep.subr.bf16.mxu0 0
        %825 = vmatpush1.bf16.msra.mxu0 0
        %826 = vmatprep.subr.bf16.mxu0 0
        %827 = vmatpush1.bf16.msra.mxu0 0
        %828 = vmatprep.subr.bf16.mxu0 0
        %829 = vmatpush1.bf16.msra.mxu0 0
        %830 = vmatprep.subr.bf16.mxu0 0
        %831 = vmatpush1.bf16.msra.mxu0 0
        %832 = vmatprep.mubr.bf16.mxu0 0
        %833 = vmatmul.mubr.bf16.gmra.mrb[0].mxu0 %v798
        %v834 = vpop.f32.mrb[0].mxu0
        %v835 = vadd.f32 0.0, %v834
        %v836 = vpop.f32.mrb[0].mxu0
        %v837 = vpop.f32.mrb[0].mxu0
        %v838 = vadd.f32 0.0, %v837
        %v839 = vpop.f32.mrb[0].mxu0
        %840 = vdwg.mxu0
        %v841 = vrcp.pop %v792
        %v842 = vrcp.pop %v795
        %v843 = vmul.f32 %v835, %v841
        %v844 = vmul.f32 %v838, %v842
        %845 = vset.pattern.permute.xlu0 5
        %846 = vperm.xlu0 %845, %v705
        %v847 = vpop.permute.xlu0 %846
        %849 = vset.pattern.permute.xlu0 5
        %850 = vperm.xlu0 %849, %v710
        %v851 = vpop.permute.xlu0 %850
        %v853 = vlaneseq
        %v854 = vshrl.u32 %v853, 7
        %v855 = vsub.s32 1, %v854
        %v856 = vrot.slane %v729, %v855
        %v857 = vadd.f32 %v847, %v856
        %v858 = vadd.f32 %v851, %v856
        %vm859 = vcmp.gt.f32.partialorder %v857, 0.0
        %vm860 = vcmp.gt.f32.partialorder %v858, 0.0
        %v861 = vmul.f32 %v857, 0.2
        %v862 = vmul.f32 %v858, 0.2
        %v863 = vsel %vm859, %v857, %v861
        %v864 = vsel %vm860, %v858, %v862
        %v865 = vadd.f32 %v863, %v747
        %v866 = vadd.f32 %v864, %v748
        %v867 = vsel %vm777, %v865, -inf
        %868 = vmax.xlane.f32.xlu0 %v867
        %v869 = vpop.xlane.xlu0 %868
        %v870 = vsel %vm777, %v866, -inf
        %871 = vmax.xlane.f32.xlu0 %v870
        %v872 = vpop.xlane.xlu0 %871
        %v873 = vsub.f32 %v865, %v869
        %v874 = vsub.f32 %v866, %v872
        %v875 = vmul.f32 %v873, 1.442695
        %v876 = vpow.pop %v875
        %v877 = vmul.f32 %v874, 1.442695
        %v878 = vpow.pop %v877
        %v879 = vsel %vm777, %v876, 0.0
        %880 = vadd.xlane.f32.xlu0 %v879
        %v881 = vpop.xlane.xlu0 %880
        %v882 = vsel %vm777, %v878, 0.0
        %883 = vadd.xlane.f32.xlu0 %v882
        %v884 = vpop.xlane.xlu0 %883
        %v885 = vpack.c.bf16 %v878, %v876
        %890 = vrot.lane.b32.xlu0 %v749, 120
        %v891 = vpop.permute.xlu0 %890
        %892 = vrot.lane.b32.xlu0 %v750, 120
        %v893 = vpop.permute.xlu0 %892
        %894 = vrot.lane.b32.xlu0 %v751, 120
        %v895 = vpop.permute.xlu0 %894
        %896 = vrot.lane.b32.xlu0 %v752, 120
        %v897 = vpop.permute.xlu0 %896
        %v903 = vsel %vm777, %v885, 0
        %905 = vmatprep.subr.bf16.mxu0 0
        %906 = vmatpush1.bf16.msra.mxu0 %v891
        %907 = vmatprep.subr.bf16.mxu0 0
        %908 = vmatpush1.bf16.msra.mxu0 %v893
        %909 = vmatprep.subr.bf16.mxu0 0
        %910 = vmatpush1.bf16.msra.mxu0 %v895
        %911 = vmatprep.subr.bf16.mxu0 0
        %912 = vmatpush1.bf16.msra.mxu0 %v897
        %913 = vmatprep.subr.bf16.mxu0 0
        %914 = vmatpush1.bf16.msra.mxu0 0
        %915 = vmatprep.subr.bf16.mxu0 0
        %916 = vmatpush1.bf16.msra.mxu0 0
        %917 = vmatprep.subr.bf16.mxu0 0
        %918 = vmatpush1.bf16.msra.mxu0 0
        %919 = vmatprep.subr.bf16.mxu0 0
        %920 = vmatpush1.bf16.msra.mxu0 0
        %921 = vmatprep.subr.bf16.mxu0 0
        %922 = vmatpush1.bf16.msra.mxu0 0
        %923 = vmatprep.subr.bf16.mxu0 0
        %924 = vmatpush1.bf16.msra.mxu0 0
        %925 = vmatprep.subr.bf16.mxu0 0
        %926 = vmatpush1.bf16.msra.mxu0 0
        %927 = vmatprep.subr.bf16.mxu0 0
        %928 = vmatpush1.bf16.msra.mxu0 0
        %929 = vmatprep.subr.bf16.mxu0 0
        %930 = vmatpush1.bf16.msra.mxu0 0
        %931 = vmatprep.subr.bf16.mxu0 0
        %932 = vmatpush1.bf16.msra.mxu0 0
        %933 = vmatprep.subr.bf16.mxu0 0
        %934 = vmatpush1.bf16.msra.mxu0 0
        %935 = vmatprep.subr.bf16.mxu0 0
        %936 = vmatpush1.bf16.msra.mxu0 0
        %937 = vmatprep.mubr.bf16.mxu0 0
        %938 = vmatmul.mubr.bf16.gmra.mrb[0].mxu0 %v903
        %v939 = vpop.f32.mrb[0].mxu0
        %v940 = vadd.f32 0.0, %v939
        %v941 = vpop.f32.mrb[0].mxu0
        %v942 = vpop.f32.mrb[0].mxu0
        %v943 = vadd.f32 0.0, %v942
        %v944 = vpop.f32.mrb[0].mxu0
        %945 = vdwg.mxu0
        %v946 = vrcp.pop %v881
        %v947 = vrcp.pop %v884
        %v948 = vmul.f32 %v940, %v946
        %v949 = vmul.f32 %v943, %v947
        %950 = vset.pattern.permute.xlu0 6
        %951 = vperm.xlu0 %950, %v705
        %v952 = vpop.permute.xlu0 %951
        %954 = vset.pattern.permute.xlu0 6
        %955 = vperm.xlu0 %954, %v710
        %v956 = vpop.permute.xlu0 %955
        %v958 = vlaneseq
        %v959 = vshrl.u32 %v958, 7
        %v960 = vsub.s32 2, %v959
        %v961 = vrot.slane %v729, %v960
        %v962 = vadd.f32 %v952, %v961
        %v963 = vadd.f32 %v956, %v961
        %vm964 = vcmp.gt.f32.partialorder %v962, 0.0
        %vm965 = vcmp.gt.f32.partialorder %v963, 0.0
        %v966 = vmul.f32 %v962, 0.2
        %v967 = vmul.f32 %v963, 0.2
        %v968 = vsel %vm964, %v962, %v966
        %v969 = vsel %vm965, %v963, %v967
        %v970 = vadd.f32 %v968, %v747
        %v971 = vadd.f32 %v969, %v748
        %v972 = vsel %vm777, %v970, -inf
        %973 = vmax.xlane.f32.xlu0 %v972
        %v974 = vpop.xlane.xlu0 %973
        %v975 = vsel %vm777, %v971, -inf
        %976 = vmax.xlane.f32.xlu0 %v975
        %v977 = vpop.xlane.xlu0 %976
        %v978 = vsub.f32 %v970, %v974
        %v979 = vsub.f32 %v971, %v977
        %v980 = vmul.f32 %v978, 1.442695
        %v981 = vpow.pop %v980
        %v982 = vmul.f32 %v979, 1.442695
        %v983 = vpow.pop %v982
        %v984 = vsel %vm777, %v981, 0.0
        %985 = vadd.xlane.f32.xlu0 %v984
        %v986 = vpop.xlane.xlu0 %985
        %v987 = vsel %vm777, %v983, 0.0
        %988 = vadd.xlane.f32.xlu0 %v987
        %v989 = vpop.xlane.xlu0 %988
        %v990 = vpack.c.bf16 %v983, %v981
        %991 = vrot.lane.b32.xlu0 %v749, 112
        %v992 = vpop.permute.xlu0 %991
        %993 = vrot.lane.b32.xlu0 %v750, 112
        %v994 = vpop.permute.xlu0 %993
        %995 = vrot.lane.b32.xlu0 %v751, 112
        %v996 = vpop.permute.xlu0 %995
        %997 = vrot.lane.b32.xlu0 %v752, 112
        %v998 = vpop.permute.xlu0 %997
        %v1004 = vsel %vm777, %v990, 0
        %1006 = vmatprep.subr.bf16.mxu0 0
        %1007 = vmatpush1.bf16.msra.mxu0 %v992
        %1008 = vmatprep.subr.bf16.mxu0 0
        %1009 = vmatpush1.bf16.msra.mxu0 %v994
        %1010 = vmatprep.subr.bf16.mxu0 0
        %1011 = vmatpush1.bf16.msra.mxu0 %v996
        %1012 = vmatprep.subr.bf16.mxu0 0
        %1013 = vmatpush1.bf16.msra.mxu0 %v998
        %1014 = vmatprep.subr.bf16.mxu0 0
        %1015 = vmatpush1.bf16.msra.mxu0 0
        %1016 = vmatprep.subr.bf16.mxu0 0
        %1017 = vmatpush1.bf16.msra.mxu0 0
        %1018 = vmatprep.subr.bf16.mxu0 0
        %1019 = vmatpush1.bf16.msra.mxu0 0
        %1020 = vmatprep.subr.bf16.mxu0 0
        %1021 = vmatpush1.bf16.msra.mxu0 0
        %1022 = vmatprep.subr.bf16.mxu0 0
        %1023 = vmatpush1.bf16.msra.mxu0 0
        %1024 = vmatprep.subr.bf16.mxu0 0
        %1025 = vmatpush1.bf16.msra.mxu0 0
        %1026 = vmatprep.subr.bf16.mxu0 0
        %1027 = vmatpush1.bf16.msra.mxu0 0
        %1028 = vmatprep.subr.bf16.mxu0 0
        %1029 = vmatpush1.bf16.msra.mxu0 0
        %1030 = vmatprep.subr.bf16.mxu0 0
        %1031 = vmatpush1.bf16.msra.mxu0 0
        %1032 = vmatprep.subr.bf16.mxu0 0
        %1033 = vmatpush1.bf16.msra.mxu0 0
        %1034 = vmatprep.subr.bf16.mxu0 0
        %1035 = vmatpush1.bf16.msra.mxu0 0
        %1036 = vmatprep.subr.bf16.mxu0 0
        %1037 = vmatpush1.bf16.msra.mxu0 0
        %1038 = vmatprep.mubr.bf16.mxu0 0
        %1039 = vmatmul.mubr.bf16.gmra.mrb[0].mxu0 %v1004
        %v1040 = vpop.f32.mrb[0].mxu0
        %v1041 = vadd.f32 0.0, %v1040
        %v1042 = vpop.f32.mrb[0].mxu0
        %v1043 = vpop.f32.mrb[0].mxu0
        %v1044 = vadd.f32 0.0, %v1043
        %v1045 = vpop.f32.mrb[0].mxu0
        %1046 = vdwg.mxu0
        %v1047 = vrcp.pop %v986
        %v1048 = vrcp.pop %v989
        %v1049 = vmul.f32 %v1041, %v1047
        %v1050 = vmul.f32 %v1044, %v1048
        %1051 = vset.pattern.permute.xlu0 7
        %1052 = vperm.xlu0 %1051, %v705
        %v1053 = vpop.permute.xlu0 %1052
        %1055 = vset.pattern.permute.xlu0 7
        %1056 = vperm.xlu0 %1055, %v710
        %v1057 = vpop.permute.xlu0 %1056
        %v1059 = vlaneseq
        %v1060 = vshrl.u32 %v1059, 7
        %v1061 = vsub.s32 3, %v1060
        %v1062 = vrot.slane %v729, %v1061
        %v1063 = vadd.f32 %v1053, %v1062
        %v1064 = vadd.f32 %v1057, %v1062
        %vm1065 = vcmp.gt.f32.partialorder %v1063, 0.0
        %vm1066 = vcmp.gt.f32.partialorder %v1064, 0.0
        %v1067 = vmul.f32 %v1063, 0.2
        %v1068 = vmul.f32 %v1064, 0.2
        %v1069 = vsel %vm1065, %v1063, %v1067
        %v1070 = vsel %vm1066, %v1064, %v1068
        %v1071 = vadd.f32 %v1069, %v747
        %v1072 = vadd.f32 %v1070, %v748
        %v1073 = vsel %vm777, %v1071, -inf
        %1074 = vmax.xlane.f32.xlu0 %v1073
        %v1075 = vpop.xlane.xlu0 %1074
        %v1076 = vsel %vm777, %v1072, -inf
        %1077 = vmax.xlane.f32.xlu0 %v1076
        %v1078 = vpop.xlane.xlu0 %1077
        %v1079 = vsub.f32 %v1071, %v1075
        %v1080 = vsub.f32 %v1072, %v1078
        %v1081 = vmul.f32 %v1079, 1.442695
        %v1082 = vpow.pop %v1081
        %v1083 = vmul.f32 %v1080, 1.442695
        %v1084 = vpow.pop %v1083
        %v1085 = vsel %vm777, %v1082, 0.0
        %1086 = vadd.xlane.f32.xlu0 %v1085
        %v1087 = vpop.xlane.xlu0 %1086
        %v1088 = vsel %vm777, %v1084, 0.0
        %1089 = vadd.xlane.f32.xlu0 %v1088
        %v1090 = vpop.xlane.xlu0 %1089
        %v1091 = vpack.c.bf16 %v1084, %v1082
        %1092 = vrot.lane.b32.xlu0 %v749, 104
        %v1093 = vpop.permute.xlu0 %1092
        %1094 = vrot.lane.b32.xlu0 %v750, 104
        %v1095 = vpop.permute.xlu0 %1094
        %1096 = vrot.lane.b32.xlu0 %v751, 104
        %v1097 = vpop.permute.xlu0 %1096
        %1098 = vrot.lane.b32.xlu0 %v752, 104
        %v1099 = vpop.permute.xlu0 %1098
        %v1105 = vsel %vm777, %v1091, 0
        %1107 = vmatprep.subr.bf16.mxu0 0
        %1108 = vmatpush1.bf16.msra.mxu0 %v1093
        %1109 = vmatprep.subr.bf16.mxu0 0
        %1110 = vmatpush1.bf16.msra.mxu0 %v1095
        %1111 = vmatprep.subr.bf16.mxu0 0
        %1112 = vmatpush1.bf16.msra.mxu0 %v1097
        %1113 = vmatprep.subr.bf16.mxu0 0
        %1114 = vmatpush1.bf16.msra.mxu0 %v1099
        %1115 = vmatprep.subr.bf16.mxu0 0
        %1116 = vmatpush1.bf16.msra.mxu0 0
        %1117 = vmatprep.subr.bf16.mxu0 0
        %1118 = vmatpush1.bf16.msra.mxu0 0
        %1119 = vmatprep.subr.bf16.mxu0 0
        %1120 = vmatpush1.bf16.msra.mxu0 0
        %1121 = vmatprep.subr.bf16.mxu0 0
        %1122 = vmatpush1.bf16.msra.mxu0 0
        %1123 = vmatprep.subr.bf16.mxu0 0
        %1124 = vmatpush1.bf16.msra.mxu0 0
        %1125 = vmatprep.subr.bf16.mxu0 0
        %1126 = vmatpush1.bf16.msra.mxu0 0
        %1127 = vmatprep.subr.bf16.mxu0 0
        %1128 = vmatpush1.bf16.msra.mxu0 0
        %1129 = vmatprep.subr.bf16.mxu0 0
        %1130 = vmatpush1.bf16.msra.mxu0 0
        %1131 = vmatprep.subr.bf16.mxu0 0
        %1132 = vmatpush1.bf16.msra.mxu0 0
        %1133 = vmatprep.subr.bf16.mxu0 0
        %1134 = vmatpush1.bf16.msra.mxu0 0
        %1135 = vmatprep.subr.bf16.mxu0 0
        %1136 = vmatpush1.bf16.msra.mxu0 0
        %1137 = vmatprep.subr.bf16.mxu0 0
        %1138 = vmatpush1.bf16.msra.mxu0 0
        %1139 = vmatprep.mubr.bf16.mxu0 0
        %1140 = vmatmul.mubr.bf16.gmra.mrb[0].mxu0 %v1105
        %v1141 = vpop.f32.mrb[0].mxu0
        %v1142 = vadd.f32 0.0, %v1141
        %v1143 = vpop.f32.mrb[0].mxu0
        %v1144 = vpop.f32.mrb[0].mxu0
        %v1145 = vadd.f32 0.0, %v1144
        %v1146 = vpop.f32.mrb[0].mxu0
        %1147 = vdwg.mxu0
        %v1148 = vrcp.pop %v1087
        %v1149 = vrcp.pop %v1090
        %v1150 = vmul.f32 %v1142, %v1148
        %v1151 = vmul.f32 %v1145, %v1149
        %1154 = vrot.lane.b32.xlu0 %v948, 8
        %v1155 = vpop.permute.xlu0 %1154
        %1156 = vrot.lane.b32.xlu0 %v949, 8
        %v1157 = vpop.permute.xlu0 %1156
        %1162 = vrot.lane.b32.xlu0 %v1049, 16
        %v1163 = vpop.permute.xlu0 %1162
        %1164 = vrot.lane.b32.xlu0 %v1050, 16
        %v1165 = vpop.permute.xlu0 %1164
        %1170 = vrot.lane.b32.xlu0 %v1150, 24
        %v1171 = vpop.permute.xlu0 %1170
        %1172 = vrot.lane.b32.xlu0 %v1151, 24
        %v1173 = vpop.permute.xlu0 %1172
        %v1176 = vsel %vm285, %v843, %v1155
        %v1177 = vsel %vm285, %v844, %v1157
        %vm1178 = vcmask 130048
        %v1179 = vsel %vm1178, %v1176, %v1163
        %v1180 = vsel %vm1178, %v1177, %v1165
        %vm1181 = vcmask 195584
        %v1182 = vsel %vm1181, %v1179, %v1171
        %v1183 = vsel %vm1181, %v1180, %v1173
        %v1184 = vld [vmem:[%s4] sm:$0x1]
        %v1186 = vlaneseq
        %v1187 = vshrl.u32 %v1186, 7
        %v1188 = vsub.s32 0, %v1187
        %v1189 = vrot.slane %v1184, %v1188
        %v1191 = vadd.f32 %v1182, %v1189
        %v1192 = vadd.f32 %v1183, %v1189
        %v1193 = vmax.f32 %v1191, 0.0
        %v1194 = vmax.f32 %v1192, 0.0
        %v1195 = vsel %vm502, %v1193, 0.0
        %v1196 = vsel %vm502, %v1194, 0.0
        %1197 = vst [vmem:[%s261] sm:$0xff] %v1195
        %1198 = vst [vmem:[%s261 + $0x8] sm:$0xff] %v1196
        %s1199 = sand.u32 %s164, 1
        %s1200 = scalar_lea.sflag [#allocation3], %s1199
        %s1201 = sand.u32 %s164, 1
        %s1202 = smul.addr %s1201, 16
        %s1203 = scalar_lea.vmem [#allocation2], %s1202
        // Predicated region
        $region45: #{tpu_custom_call.1} parent=43 // pred_check
          %p1204 = pneg %p174
        $region46: #{tpu_custom_call.1} parent=43 // pred_check_branch
          %1206 = sbr.rel (%p1204) target = $region48
        $region47: #{tpu_custom_call.1} parent=43 // pred_region
          %s1207 = smul.u32 2, %s20
          %s1209 = ssub.s32 256, 256
          %1210 = vsyncadd %s1200, %s1209
          %s1211 = smul.addr %s1207, 128
          %s1212 = scalar_lea.hbm %s6, %s1211
          %s1213 = sshll.u32 %s1203, 4
          %s1214 = int_to_ptr.vmem [resolvable:$true] %s1213
          %1219 = dma.vmem_to_hbm [thread:$0]  %s1214, 256, %s1212, %s1200, 128, 128, 8
        $region48: #{tpu_custom_call.1} parent=43 // pred_fallthru
          _
      $region44: #{tpu_custom_call.1} parent=5 // pred_fallthru
        _
      %p1220 = scmp.le.s32.totalorder 2, %s15
      // Predicated region
      $region49: #{tpu_custom_call.1} parent=5 // pred_check
        %p1221 = pneg %p1220
      $region50: #{tpu_custom_call.1} parent=5 // pred_check_branch
        %1223 = sbr.rel (%p1221) target = $region52
      $region51: #{tpu_custom_call.1} parent=5 // pred_region
        %s1224 = ssub.s32 %s15, 2
        // Predicated region
        $region53: #{tpu_custom_call.1} parent=51 // pred_check
          %p1225 = pneg %p180
        $region54: #{tpu_custom_call.1} parent=51 // pred_check_branch
          %1227 = sbr.rel (%p1225) target = $region56
        $region55: #{tpu_custom_call.1} parent=51 // pred_region
          %s1228 = sand.u32 %s165, 1
          %s1229 = scalar_lea.sflag [#allocation3], %s1228
          %s1230 = sand.u32 %s165, 1
          %s1231 = smul.addr %s1230, 16
          %s1232 = scalar_lea.vmem [#allocation2], %s1231
          %1233 = dma.done %s1229, 256
        $region56: #{tpu_custom_call.1} parent=51 // pred_fallthru
          _
      $region52: #{tpu_custom_call.1} parent=5 // pred_fallthru
        _
    $region6: #{tpu_custom_call.1} parent=1 // loop_footer
      %s19 = sadd.s32 1, %s15
    $region7: #{tpu_custom_call.1} parent=1 // loop_footer_branch
      %14 = sbr.rel target = $region3
    $region8: #{tpu_custom_call.1} parent=1 // loop_exit
      _
    %1234 = vsyncpa [#allocation3], 1
    %s1235 = scalar_lea.sflag [#allocation3], 1
    %1236 = vsyncpa %s1235, 1

</llo_original>
